<compile_context>
chip_gen: v7x
topology: tpu7x:2x2x1
jax: 0.10.0
libtpu: 0.0.40
codegen_flags: <defaults>
</compile_context>

<pallas_src>
import functools

import jax
import jax.numpy as jnp
from jax.experimental import pallas as pl
from jax.experimental.pallas import tpu as pltpu


# ------------------------------ fused kernel ------------------------------- #

def _fused_forward_kernel(xp_ref, w1_ref, b1_ref, w2_ref, b2_ref, wc_ref, bc_ref,
                          out_ref, c1_ref, p1_ref, c2_ref, *, dims):
    """Full forward pass for a tile of Bt images (grid iterates / parallelizes over batch).

    xp_ref : (Bt, H*W, 9*CIN) bf16   pre-im2col'ed conv1 patches
    w1_ref : (9*CIN, CH) bf16        b1_ref: (1, CH)  f32
    w2_ref : (9*CH,  CH) bf16        b2_ref: (1, CH)  f32
    wc_ref : (fh*fw*CH, NCP) bf16    bc_ref: (1, NCP) f32
    out_ref: (Bt, 1, NCP) f32
    c1_ref : (Bt, H, W, CH) f32          conv1 output (pre-pool)
    p1_ref : (Bt, H/2+2, W/2+2, CH) f32  zero-padded pooled-1 activation
    c2_ref : (Bt, H/2, W/2, CH) f32      conv2 output (pre-pool)
    """
    Bt, H, W, CH, NCP = dims
    h2, w2 = H // 2, W // 2
    fh, fw = H // 4, W // 4
    f32, bf16 = jnp.float32, jnp.bfloat16

    def maxpool2x2(src_ref, h, w):
        # (Bt, h, w, CH) -> (Bt, h//2, w//2, CH) via 4 strided reads + element-wise max
        ho, wo = h // 2, w // 2
        return jnp.maximum(
            jnp.maximum(src_ref[:, pl.ds(0, ho, 2), pl.ds(0, wo, 2), :],
                        src_ref[:, pl.ds(0, ho, 2), pl.ds(1, wo, 2), :]),
            jnp.maximum(src_ref[:, pl.ds(1, ho, 2), pl.ds(0, wo, 2), :],
                        src_ref[:, pl.ds(1, ho, 2), pl.ds(1, wo, 2), :]))

    # ---- conv block 1: ONE packed-K matmul (im2col prebuilt in wrapper) + bias + ReLU ----
    k1 = xp_ref.shape[-1]
    a1 = jnp.dot(xp_ref[...].reshape(Bt * H * W, k1), w1_ref[...],
                 preferred_element_type=f32)                        # (Bt*H*W, CH)
    a1 = jnp.maximum(a1 + b1_ref[...], 0.0)                         # f32 VPU epilogue
    c1_ref[...] = a1.reshape(Bt, H, W, CH)
    pooled1 = maxpool2x2(c1_ref, H, W)                              # (Bt, h2, w2, CH)

    # zero only the 1-px border of the padded scratch (interior fully overwritten below)
    p1_ref[:, pl.ds(0, 1), :, :] = jnp.zeros((Bt, 1, w2 + 2, CH), f32)
    p1_ref[:, pl.ds(h2 + 1, 1), :, :] = jnp.zeros((Bt, 1, w2 + 2, CH), f32)
    p1_ref[:, :, pl.ds(0, 1), :] = jnp.zeros((Bt, h2 + 2, 1, CH), f32)
    p1_ref[:, :, pl.ds(w2 + 1, 1), :] = jnp.zeros((Bt, h2 + 2, 1, CH), f32)
    p1_ref[:, pl.ds(1, h2), pl.ds(1, w2), :] = pooled1

    # ---- conv block 2: pack all 9 taps along K (lane concat) -> single K=9*CH matmul ----
    taps = [p1_ref[:, pl.ds(ki, h2), pl.ds(kj, w2), :]              # 9 x (Bt, h2, w2, CH)
            for ki in range(3) for kj in range(3)]
    patch2 = jnp.concatenate(taps, axis=-1)                         # (Bt, h2, w2, 9*CH)
    patch2 = patch2.reshape(Bt * h2 * w2, 9 * CH).astype(bf16)
    a2 = jnp.dot(patch2, w2_ref[...], preferred_element_type=f32)   # (Bt*h2*w2, CH)
    a2 = jnp.maximum(a2 + b2_ref[...], 0.0)
    c2_ref[...] = a2.reshape(Bt, h2, w2, CH)
    pooled2 = maxpool2x2(c2_ref, h2, w2)                            # (Bt, fh, fw, CH)

    # ---- classifier: flatten (i, j, c) along lanes -> ONE K = fh*fw*CH matmul ----
    feat = jnp.concatenate(
        [pooled2[:, i:i + 1, j:j + 1, :] for i in range(fh) for j in range(fw)],
        axis=-1)                                                    # (Bt, 1, 1, fh*fw*CH)
    feat = feat.reshape(Bt, fh * fw * CH).astype(bf16)
    scores = jnp.dot(feat, wc_ref[...], preferred_element_type=f32) + bc_ref[...]
    out_ref[...] = scores.reshape(Bt, 1, NCP)                       # lane-dense (NCP=128k)


# ------------------------------ pallas_call wrapper -------------------------- #

def _pick_btile(batch):
    """Images per grid step: keep >= 2 grid steps (v7x has 2 TensorCores), cap the tile."""
    if batch <= 2:
        return 1
    bt = min(4, batch // 2)
    while batch % bt:
        bt -= 1
    return max(bt, 1)


def _run_forward(patches, hw, w1, b1, w2, b2, wc, bc):
    """Single fused pallas_call over the whole forward pass; grid = (batch // Bt,)."""
    B, HW, K1 = patches.shape
    H, W = hw
    CH = w1.shape[-1]
    NCP = wc.shape[-1]
    Bt = _pick_btile(B)

    kern = functools.partial(_fused_forward_kernel, dims=(Bt, H, W, CH, NCP))
    out = pl.pallas_call(
        kern,
        out_shape=jax.ShapeDtypeStruct((B, 1, NCP), jnp.float32),
        grid_spec=pltpu.PrefetchScalarGridSpec(
            num_scalar_prefetch=0,
            grid=(B // Bt,),
            in_specs=[
                pl.BlockSpec((Bt, HW, K1), lambda b: (b, 0, 0)),    # per-step image tile
                pl.BlockSpec(w1.shape, lambda b: (0, 0)),           # weights stay resident
                pl.BlockSpec(b1.shape, lambda b: (0, 0)),
                pl.BlockSpec(w2.shape, lambda b: (0, 0)),
                pl.BlockSpec(b2.shape, lambda b: (0, 0)),
                pl.BlockSpec(wc.shape, lambda b: (0, 0)),
                pl.BlockSpec(bc.shape, lambda b: (0, 0)),
            ],
            out_specs=pl.BlockSpec((Bt, 1, NCP), lambda b: (b, 0, 0)),
            scratch_shapes=[
                pltpu.VMEM((Bt, H, W, CH), jnp.float32),                    # conv1 out
                pltpu.VMEM((Bt, H // 2 + 2, W // 2 + 2, CH), jnp.float32),  # padded pool1
                pltpu.VMEM((Bt, H // 2, W // 2, CH), jnp.float32),          # conv2 out
            ],
        ),
        compiler_params=pltpu.CompilerParams(
            dimension_semantics=("parallel",)),    # batch steps split across v7x's 2 TCs
    )(patches, w1, b1, w2, b2, wc, bc)
    return out


@jax.jit
def baseline_forward(x_nchw, w1, b1, w2, b2, wc, bc):
    """NCHW input -> padded class scores (B, NCP). Only layout prep (transpose / pad /
    conv1 im2col / bf16 cast) stays outside Pallas; the rest is one fused kernel."""
    B, C, H, W = x_nchw.shape
    x = jnp.transpose(x_nchw.astype(jnp.float32), (0, 2, 3, 1))     # NCHW -> NHWC
    xp = jnp.pad(x, ((0, 0), (1, 1), (1, 1), (0, 0)))
    patches = jnp.concatenate(
        [xp[:, ki:ki + H, kj:kj + W, :] for ki in range(3) for kj in range(3)],
        axis=-1)                                                    # (B, H, W, 9*C)
    patches = patches.reshape(B, H * W, 9 * C).astype(jnp.bfloat16)
    out = _run_forward(patches, (H, W), w1, b1, w2, b2, wc, bc)     # (B, 1, NCP)
    return out.reshape(B, -1)


# ------------------------------- model wrapper ------------------------------ #

class BaselineTrainPallas:
    """JAX/Pallas equivalent of BaselineTrain(model_func=Conv4-lite, loss_type='softmax')."""

    def __init__(self, num_class, in_channels=4, hidden=32, img_size=16, key=None):
        if key is None:
            key = jax.random.PRNGKey(0)
        assert img_size % 4 == 0
        k1, k2, k3, k4, k5 = jax.random.split(key, 5)
        self.num_class = num_class
        self.in_channels = in_channels
        self.hidden = hidden
        self.img_size = img_size

        # PyTorch-layout parameters (backbone = 2x[Conv3x3+ReLU+MaxPool2], Linear classifier).
        self.conv1_w = 0.05 * jax.random.normal(k1, (hidden, in_channels, 3, 3), jnp.float32)
        self.conv1_b = 0.05 * jax.random.normal(k2, (hidden,), jnp.float32)
        self.conv2_w = 0.05 * jax.random.normal(k3, (hidden, hidden, 3, 3), jnp.float32)
        self.conv2_b = 0.05 * jax.random.normal(k4, (hidden,), jnp.float32)
        fs = img_size // 4
        self.final_feat_dim = hidden * fs * fs
        self.clf_w = 0.05 * jax.random.normal(k5, (num_class, self.final_feat_dim), jnp.float32)
        self.clf_b = jnp.zeros((num_class,), jnp.float32)            # bias.data.fill_(0)

        # --- kernel-layout parameters (permutes / K packing / NC padding folded at init) ---
        ncp = ((num_class + 127) // 128) * 128                       # lane-dense output
        self.ncp = ncp
        self.w1_k = (jnp.transpose(self.conv1_w, (2, 3, 1, 0))       # (3,3,cin,cout)
                     .reshape(9 * in_channels, hidden).astype(jnp.bfloat16))
        self.b1_k = self.conv1_b.reshape(1, hidden)
        self.w2_k = (jnp.transpose(self.conv2_w, (2, 3, 1, 0))
                     .reshape(9 * hidden, hidden).astype(jnp.bfloat16))
        self.b2_k = self.conv2_b.reshape(1, hidden)
        # classifier weight: fold torch NCHW-flatten (c*fs*fs + i*fs + j) into (i, j, c) order
        wc = jnp.transpose(self.clf_w.reshape(num_class, hidden, fs, fs), (2, 3, 1, 0))
        wc = wc.reshape(fs * fs * hidden, num_class)
        self.wc_k = jnp.pad(wc, ((0, 0), (0, ncp - num_class))).astype(jnp.bfloat16)
        self.bc_k = jnp.pad(self.clf_b, (0, ncp - num_class)).reshape(1, ncp)

    def forward(self, x_nchw):
        scores = baseline_forward(x_nchw, self.w1_k, self.b1_k, self.w2_k, self.b2_k,
                                  self.wc_k, self.bc_k)
        return scores[:, :self.num_class]

    # TODO(synk): forward_loss / train_loop / test_loop are the CrossEntropyLoss +
    # optimizer training harness (host-side loop), intentionally not part of the kernel.


# ------------------------------ pure-JAX reference -------------------------- #

def _reference_forward(x_nchw, model):
    x = jnp.transpose(x_nchw.astype(jnp.float32), (0, 2, 3, 1))

    def block(x, w, b):   # w: torch layout (cout, cin, 3, 3)
        N, H, W, _ = x.shape
        xp = jnp.pad(x, ((0, 0), (1, 1), (1, 1), (0, 0)))
        acc = jnp.zeros((N, H, W, w.shape[0]), jnp.float32)
        for ki in range(3):
            for kj in range(3):
                acc = acc + jnp.einsum('nhwc,oc->nhwo',
                                       xp[:, ki:ki + H, kj:kj + W, :], w[:, :, ki, kj])
        acc = jnp.maximum(acc + b, 0.0)
        return acc.reshape(N, H // 2, 2, W // 2, 2, -1).max(axis=(2, 4))

    h = block(x, model.conv1_w, model.conv1_b)
    h = block(h, model.conv2_w, model.conv2_b)
    feat = jnp.transpose(h, (0, 3, 1, 2)).reshape(x.shape[0], -1)    # torch .view(N,-1)
    return feat @ model.clf_w.T + model.clf_b


# ----------------------------------- main ----------------------------------- #

if __name__ == "__main__":
    key = jax.random.PRNGKey(0)
    k_x, k_p = jax.random.split(key)

    batch, channels, img = 2, 4, 16
    num_class = 5

    x = jax.random.normal(k_x, (batch, channels, img, img), jnp.float32)  # NCHW input

    model = BaselineTrainPallas(num_class=num_class, in_channels=channels,
                                hidden=32, img_size=img, key=k_p)

    scores = model.forward(x)
    scores = jax.block_until_ready(scores)

    assert scores.shape == (batch, num_class), scores.shape
    assert scores.dtype == jnp.float32
    assert bool(jnp.all(jnp.isfinite(scores)))

    # correctness vs. pure-JAX reference (loose tolerance: bf16 MXU operands)
    ref = _reference_forward(x, model)
    err = float(jnp.max(jnp.abs(scores - ref)))
    scale = float(jnp.max(jnp.abs(ref)))
    assert err <= 0.05 * scale + 1e-4, (err, scale)

    print("KERNEL_OK")
</pallas_src>

<mosaic_0001>
module attributes {stable_mosaic.version = 11 : i64} {
  func.func @_fused_forward_kernel(%arg0: i32, %arg1: memref<1x256x36xbf16, #tpu.memory_space<vmem>>, %arg2: memref<36x32xbf16, #tpu.memory_space<vmem>>, %arg3: memref<1x32xf32, #tpu.memory_space<vmem>>, %arg4: memref<288x32xbf16, #tpu.memory_space<vmem>>, %arg5: memref<1x32xf32, #tpu.memory_space<vmem>>, %arg6: memref<512x128xbf16, #tpu.memory_space<vmem>>, %arg7: memref<1x128xf32, #tpu.memory_space<vmem>>, %arg8: memref<1x1x128xf32, #tpu.memory_space<vmem>>, %arg9: memref<1x16x16x32xf32, #tpu.memory_space<vmem>>, %arg10: memref<1x10x10x32xf32, #tpu.memory_space<vmem>>, %arg11: memref<1x8x8x32xf32, #tpu.memory_space<vmem>>) attributes {dimension_semantics = [#tpu.dimension_semantics<parallel>], iteration_bounds = array<i64: 2>, scalar_prefetch = 0 : i64, scratch_operands = 3 : i64, tpu.core_type = #tpu.core_type<tc>, window_params = [{transform_indices = @transform_0, window_bounds = array<i64: 1, 256, 36>}, {pipeline_mode = #tpu.pipeline_mode<synchronous>, transform_indices = @transform_1, window_bounds = array<i64: 36, 32>}, {pipeline_mode = #tpu.pipeline_mode<synchronous>, transform_indices = @transform_2, window_bounds = array<i64: 1, 32>}, {pipeline_mode = #tpu.pipeline_mode<synchronous>, transform_indices = @transform_3, window_bounds = array<i64: 288, 32>}, {pipeline_mode = #tpu.pipeline_mode<synchronous>, transform_indices = @transform_4, window_bounds = array<i64: 1, 32>}, {pipeline_mode = #tpu.pipeline_mode<synchronous>, transform_indices = @transform_5, window_bounds = array<i64: 512, 128>}, {pipeline_mode = #tpu.pipeline_mode<synchronous>, transform_indices = @transform_6, window_bounds = array<i64: 1, 128>}, {transform_indices = @transform_7, window_bounds = array<i64: 1, 1, 128>}]} {
    %c0 = arith.constant 0 : index
    %c0_0 = arith.constant 0 : index
    %c0_1 = arith.constant 0 : index
    %0 = vector.load %arg1[%c0, %c0_0, %c0_1] : memref<1x256x36xbf16, #tpu.memory_space<vmem>>, vector<1x256x36xbf16>
    %1 = vector.shape_cast %0 : vector<1x256x36xbf16> to vector<256x36xbf16>
    %c0_2 = arith.constant 0 : index
    %c0_3 = arith.constant 0 : index
    %2 = vector.load %arg2[%c0_2, %c0_3] : memref<36x32xbf16, #tpu.memory_space<vmem>>, vector<36x32xbf16>
    %cst = arith.constant dense<0.000000e+00> : vector<256x32xf32>
    %3 = tpu.matmul %1, %2, %cst {dimension_numbers = #tpu.dot_dimension_numbers<[1], [0], [0], [1], [0, 0, 1, 1], [], []>} : vector<256x36xbf16>, vector<36x32xbf16>, vector<256x32xf32> -> vector<256x32xf32>
    %c0_4 = arith.constant 0 : index
    %c0_5 = arith.constant 0 : index
    %4 = vector.load %arg3[%c0_4, %c0_5] : memref<1x32xf32, #tpu.memory_space<vmem>>, vector<1x32xf32>
    %5 = vector.broadcast %4 : vector<1x32xf32> to vector<256x32xf32>
    %6 = arith.addf %3, %5 : vector<256x32xf32>
    %cst_6 = arith.constant 0.000000e+00 : f32
    %7 = vector.broadcast %cst_6 : f32 to vector<256x32xf32>
    %8 = arith.maximumf %6, %7 : vector<256x32xf32>
    %9 = vector.shape_cast %8 : vector<256x32xf32> to vector<1x16x16x32xf32>
    %c0_7 = arith.constant 0 : index
    %c0_8 = arith.constant 0 : index
    %c0_9 = arith.constant 0 : index
    %c0_10 = arith.constant 0 : index
    %10 = vector.load %arg9[%c0_7, %c0_8, %c0_9, %c0_10] : memref<1x16x16x32xf32, #tpu.memory_space<vmem>>, vector<1x16x16x32xf32>
    tpu.vector_store %arg9[%c0_7, %c0_8, %c0_9, %c0_10], %9 {strides = array<i32>} : memref<1x16x16x32xf32, #tpu.memory_space<vmem>>, vector<1x16x16x32xf32>,
    %c0_11 = arith.constant 0 : index
    %c0_12 = arith.constant 0 : index
    %c0_13 = arith.constant 0 : index
    %c0_14 = arith.constant 0 : index
    %11 = tpu.strided_load %arg9[%c0_11, %c0_12, %c0_13, %c0_14] {strides = array<i32: 1, 2, 2, 1>} : memref<1x16x16x32xf32, #tpu.memory_space<vmem>>, vector<1x8x8x32xf32>
    %c0_15 = arith.constant 0 : index
    %c0_16 = arith.constant 0 : index
    %c1 = arith.constant 1 : index
    %c0_17 = arith.constant 0 : index
    %12 = tpu.strided_load %arg9[%c0_15, %c0_16, %c1, %c0_17] {strides = array<i32: 1, 2, 2, 1>} : memref<1x16x16x32xf32, #tpu.memory_space<vmem>>, vector<1x8x8x32xf32>
    %13 = arith.maximumf %11, %12 : vector<1x8x8x32xf32>
    %c0_18 = arith.constant 0 : index
    %c1_19 = arith.constant 1 : index
    %c0_20 = arith.constant 0 : index
    %c0_21 = arith.constant 0 : index
    %14 = tpu.strided_load %arg9[%c0_18, %c1_19, %c0_20, %c0_21] {strides = array<i32: 1, 2, 2, 1>} : memref<1x16x16x32xf32, #tpu.memory_space<vmem>>, vector<1x8x8x32xf32>
    %c0_22 = arith.constant 0 : index
    %c1_23 = arith.constant 1 : index
    %c1_24 = arith.constant 1 : index
    %c0_25 = arith.constant 0 : index
    %15 = tpu.strided_load %arg9[%c0_22, %c1_23, %c1_24, %c0_25] {strides = array<i32: 1, 2, 2, 1>} : memref<1x16x16x32xf32, #tpu.memory_space<vmem>>, vector<1x8x8x32xf32>
    %16 = arith.maximumf %14, %15 : vector<1x8x8x32xf32>
    %17 = arith.maximumf %13, %16 : vector<1x8x8x32xf32>
    %cst_26 = arith.constant 0.000000e+00 : f32
    %18 = vector.broadcast %cst_26 : f32 to vector<1x1x10x32xf32>
    %c0_27 = arith.constant 0 : index
    %c0_28 = arith.constant 0 : index
    %c0_29 = arith.constant 0 : index
    %c0_30 = arith.constant 0 : index
    %19 = vector.load %arg10[%c0_27, %c0_28, %c0_29, %c0_30] : memref<1x10x10x32xf32, #tpu.memory_space<vmem>>, vector<1x1x10x32xf32>
    tpu.vector_store %arg10[%c0_27, %c0_28, %c0_29, %c0_30], %18 {strides = array<i32>} : memref<1x10x10x32xf32, #tpu.memory_space<vmem>>, vector<1x1x10x32xf32>,
    %cst_31 = arith.constant 0.000000e+00 : f32
    %20 = vector.broadcast %cst_31 : f32 to vector<1x1x10x32xf32>
    %c0_32 = arith.constant 0 : index
    %c9 = arith.constant 9 : index
    %c0_33 = arith.constant 0 : index
    %c0_34 = arith.constant 0 : index
    %21 = vector.load %arg10[%c0_32, %c9, %c0_33, %c0_34] : memref<1x10x10x32xf32, #tpu.memory_space<vmem>>, vector<1x1x10x32xf32>
    tpu.vector_store %arg10[%c0_32, %c9, %c0_33, %c0_34], %20 {strides = array<i32>} : memref<1x10x10x32xf32, #tpu.memory_space<vmem>>, vector<1x1x10x32xf32>,
    %cst_35 = arith.constant 0.000000e+00 : f32
    %22 = vector.broadcast %cst_35 : f32 to vector<1x10x1x32xf32>
    %c0_36 = arith.constant 0 : index
    %c0_37 = arith.constant 0 : index
    %c0_38 = arith.constant 0 : index
    %c0_39 = arith.constant 0 : index
    %23 = vector.load %arg10[%c0_36, %c0_37, %c0_38, %c0_39] : memref<1x10x10x32xf32, #tpu.memory_space<vmem>>, vector<1x10x1x32xf32>
    tpu.vector_store %arg10[%c0_36, %c0_37, %c0_38, %c0_39], %22 {strides = array<i32>} : memref<1x10x10x32xf32, #tpu.memory_space<vmem>>, vector<1x10x1x32xf32>,
    %cst_40 = arith.constant 0.000000e+00 : f32
    %24 = vector.broadcast %cst_40 : f32 to vector<1x10x1x32xf32>
    %c0_41 = arith.constant 0 : index
    %c0_42 = arith.constant 0 : index
    %c9_43 = arith.constant 9 : index
    %c0_44 = arith.constant 0 : index
    %25 = vector.load %arg10[%c0_41, %c0_42, %c9_43, %c0_44] : memref<1x10x10x32xf32, #tpu.memory_space<vmem>>, vector<1x10x1x32xf32>
    tpu.vector_store %arg10[%c0_41, %c0_42, %c9_43, %c0_44], %24 {strides = array<i32>} : memref<1x10x10x32xf32, #tpu.memory_space<vmem>>, vector<1x10x1x32xf32>,
    %c0_45 = arith.constant 0 : index
    %c1_46 = arith.constant 1 : index
    %c1_47 = arith.constant 1 : index
    %c0_48 = arith.constant 0 : index
    %26 = vector.load %arg10[%c0_45, %c1_46, %c1_47, %c0_48] : memref<1x10x10x32xf32, #tpu.memory_space<vmem>>, vector<1x8x8x32xf32>
    tpu.vector_store %arg10[%c0_45, %c1_46, %c1_47, %c0_48], %17 {strides = array<i32>} : memref<1x10x10x32xf32, #tpu.memory_space<vmem>>, vector<1x8x8x32xf32>,
    %c0_49 = arith.constant 0 : index
    %c0_50 = arith.constant 0 : index
    %c0_51 = arith.constant 0 : index
    %c0_52 = arith.constant 0 : index
    %27 = vector.load %arg10[%c0_49, %c0_50, %c0_51, %c0_52] : memref<1x10x10x32xf32, #tpu.memory_space<vmem>>, vector<1x8x8x32xf32>
    %c0_53 = arith.constant 0 : index
    %c0_54 = arith.constant 0 : index
    %c1_55 = arith.constant 1 : index
    %c0_56 = arith.constant 0 : index
    %28 = vector.load %arg10[%c0_53, %c0_54, %c1_55, %c0_56] : memref<1x10x10x32xf32, #tpu.memory_space<vmem>>, vector<1x8x8x32xf32>
    %c0_57 = arith.constant 0 : index
    %c0_58 = arith.constant 0 : index
    %c2 = arith.constant 2 : index
    %c0_59 = arith.constant 0 : index
    %29 = vector.load %arg10[%c0_57, %c0_58, %c2, %c0_59] : memref<1x10x10x32xf32, #tpu.memory_space<vmem>>, vector<1x8x8x32xf32>
    %c0_60 = arith.constant 0 : index
    %c1_61 = arith.constant 1 : index
    %c0_62 = arith.constant 0 : index
    %c0_63 = arith.constant 0 : index
    %30 = vector.load %arg10[%c0_60, %c1_61, %c0_62, %c0_63] : memref<1x10x10x32xf32, #tpu.memory_space<vmem>>, vector<1x8x8x32xf32>
    %c0_64 = arith.constant 0 : index
    %c1_65 = arith.constant 1 : index
    %c1_66 = arith.constant 1 : index
    %c0_67 = arith.constant 0 : index
    %31 = vector.load %arg10[%c0_64, %c1_65, %c1_66, %c0_67] : memref<1x10x10x32xf32, #tpu.memory_space<vmem>>, vector<1x8x8x32xf32>
    %c0_68 = arith.constant 0 : index
    %c1_69 = arith.constant 1 : index
    %c2_70 = arith.constant 2 : index
    %c0_71 = arith.constant 0 : index
    %32 = vector.load %arg10[%c0_68, %c1_69, %c2_70, %c0_71] : memref<1x10x10x32xf32, #tpu.memory_space<vmem>>, vector<1x8x8x32xf32>
    %c0_72 = arith.constant 0 : index
    %c2_73 = arith.constant 2 : index
    %c0_74 = arith.constant 0 : index
    %c0_75 = arith.constant 0 : index
    %33 = vector.load %arg10[%c0_72, %c2_73, %c0_74, %c0_75] : memref<1x10x10x32xf32, #tpu.memory_space<vmem>>, vector<1x8x8x32xf32>
    %c0_76 = arith.constant 0 : index
    %c2_77 = arith.constant 2 : index
    %c1_78 = arith.constant 1 : index
    %c0_79 = arith.constant 0 : index
    %34 = vector.load %arg10[%c0_76, %c2_77, %c1_78, %c0_79] : memref<1x10x10x32xf32, #tpu.memory_space<vmem>>, vector<1x8x8x32xf32>
    %c0_80 = arith.constant 0 : index
    %c2_81 = arith.constant 2 : index
    %c2_82 = arith.constant 2 : index
    %c0_83 = arith.constant 0 : index
    %35 = vector.load %arg10[%c0_80, %c2_81, %c2_82, %c0_83] : memref<1x10x10x32xf32, #tpu.memory_space<vmem>>, vector<1x8x8x32xf32>
    %36 = tpu.concatenate %27, %28, %29, %30, %31, %32, %33, %34, %35 in 3 : vector<1x8x8x32xf32>, vector<1x8x8x32xf32>, vector<1x8x8x32xf32>, vector<1x8x8x32xf32>, vector<1x8x8x32xf32>, vector<1x8x8x32xf32>, vector<1x8x8x32xf32>, vector<1x8x8x32xf32>, vector<1x8x8x32xf32> -> vector<1x8x8x288xf32>
    %37 = vector.shape_cast %36 : vector<1x8x8x288xf32> to vector<64x288xf32>
    %38 = arith.truncf %37 : vector<64x288xf32> to vector<64x288xbf16>
    %c0_84 = arith.constant 0 : index
    %c0_85 = arith.constant 0 : index
    %39 = vector.load %arg4[%c0_84, %c0_85] : memref<288x32xbf16, #tpu.memory_space<vmem>>, vector<288x32xbf16>
    %cst_86 = arith.constant dense<0.000000e+00> : vector<64x32xf32>
    %40 = tpu.matmul %38, %39, %cst_86 {dimension_numbers = #tpu.dot_dimension_numbers<[1], [0], [0], [1], [0, 0, 1, 1], [], []>} : vector<64x288xbf16>, vector<288x32xbf16>, vector<64x32xf32> -> vector<64x32xf32>
    %c0_87 = arith.constant 0 : index
    %c0_88 = arith.constant 0 : index
    %41 = vector.load %arg5[%c0_87, %c0_88] : memref<1x32xf32, #tpu.memory_space<vmem>>, vector<1x32xf32>
    %42 = vector.broadcast %41 : vector<1x32xf32> to vector<64x32xf32>
    %43 = arith.addf %40, %42 : vector<64x32xf32>
    %cst_89 = arith.constant 0.000000e+00 : f32
    %44 = vector.broadcast %cst_89 : f32 to vector<64x32xf32>
    %45 = arith.maximumf %43, %44 : vector<64x32xf32>
    %46 = vector.shape_cast %45 : vector<64x32xf32> to vector<1x8x8x32xf32>
    %c0_90 = arith.constant 0 : index
    %c0_91 = arith.constant 0 : index
    %c0_92 = arith.constant 0 : index
    %c0_93 = arith.constant 0 : index
    %47 = vector.load %arg11[%c0_90, %c0_91, %c0_92, %c0_93] : memref<1x8x8x32xf32, #tpu.memory_space<vmem>>, vector<1x8x8x32xf32>
    tpu.vector_store %arg11[%c0_90, %c0_91, %c0_92, %c0_93], %46 {strides = array<i32>} : memref<1x8x8x32xf32, #tpu.memory_space<vmem>>, vector<1x8x8x32xf32>,
    %c0_94 = arith.constant 0 : index
    %c0_95 = arith.constant 0 : index
    %c0_96 = arith.constant 0 : index
    %c0_97 = arith.constant 0 : index
    %48 = tpu.strided_load %arg11[%c0_94, %c0_95, %c0_96, %c0_97] {strides = array<i32: 1, 2, 2, 1>} : memref<1x8x8x32xf32, #tpu.memory_space<vmem>>, vector<1x4x4x32xf32>
    %c0_98 = arith.constant 0 : index
    %c0_99 = arith.constant 0 : index
    %c1_100 = arith.constant 1 : index
    %c0_101 = arith.constant 0 : index
    %49 = tpu.strided_load %arg11[%c0_98, %c0_99, %c1_100, %c0_101] {strides = array<i32: 1, 2, 2, 1>} : memref<1x8x8x32xf32, #tpu.memory_space<vmem>>, vector<1x4x4x32xf32>
    %50 = arith.maximumf %48, %49 : vector<1x4x4x32xf32>
    %c0_102 = arith.constant 0 : index
    %c1_103 = arith.constant 1 : index
    %c0_104 = arith.constant 0 : index
    %c0_105 = arith.constant 0 : index
    %51 = tpu.strided_load %arg11[%c0_102, %c1_103, %c0_104, %c0_105] {strides = array<i32: 1, 2, 2, 1>} : memref<1x8x8x32xf32, #tpu.memory_space<vmem>>, vector<1x4x4x32xf32>
    %c0_106 = arith.constant 0 : index
    %c1_107 = arith.constant 1 : index
    %c1_108 = arith.constant 1 : index
    %c0_109 = arith.constant 0 : index
    %52 = tpu.strided_load %arg11[%c0_106, %c1_107, %c1_108, %c0_109] {strides = array<i32: 1, 2, 2, 1>} : memref<1x8x8x32xf32, #tpu.memory_space<vmem>>, vector<1x4x4x32xf32>
    %53 = arith.maximumf %51, %52 : vector<1x4x4x32xf32>
    %54 = arith.maximumf %50, %53 : vector<1x4x4x32xf32>
    %55 = vector.extract_strided_slice %54 {offsets = [0, 0, 0, 0], sizes = [1, 1, 1, 32], strides = [1, 1, 1, 1]} : vector<1x4x4x32xf32> to vector<1x1x1x32xf32>
    %56 = vector.extract_strided_slice %54 {offsets = [0, 0, 1, 0], sizes = [1, 1, 1, 32], strides = [1, 1, 1, 1]} : vector<1x4x4x32xf32> to vector<1x1x1x32xf32>
    %57 = vector.extract_strided_slice %54 {offsets = [0, 0, 2, 0], sizes = [1, 1, 1, 32], strides = [1, 1, 1, 1]} : vector<1x4x4x32xf32> to vector<1x1x1x32xf32>
    %58 = vector.extract_strided_slice %54 {offsets = [0, 0, 3, 0], sizes = [1, 1, 1, 32], strides = [1, 1, 1, 1]} : vector<1x4x4x32xf32> to vector<1x1x1x32xf32>
    %59 = vector.extract_strided_slice %54 {offsets = [0, 1, 0, 0], sizes = [1, 1, 1, 32], strides = [1, 1, 1, 1]} : vector<1x4x4x32xf32> to vector<1x1x1x32xf32>
    %60 = vector.extract_strided_slice %54 {offsets = [0, 1, 1, 0], sizes = [1, 1, 1, 32], strides = [1, 1, 1, 1]} : vector<1x4x4x32xf32> to vector<1x1x1x32xf32>
    %61 = vector.extract_strided_slice %54 {offsets = [0, 1, 2, 0], sizes = [1, 1, 1, 32], strides = [1, 1, 1, 1]} : vector<1x4x4x32xf32> to vector<1x1x1x32xf32>
    %62 = vector.extract_strided_slice %54 {offsets = [0, 1, 3, 0], sizes = [1, 1, 1, 32], strides = [1, 1, 1, 1]} : vector<1x4x4x32xf32> to vector<1x1x1x32xf32>
    %63 = vector.extract_strided_slice %54 {offsets = [0, 2, 0, 0], sizes = [1, 1, 1, 32], strides = [1, 1, 1, 1]} : vector<1x4x4x32xf32> to vector<1x1x1x32xf32>
    %64 = vector.extract_strided_slice %54 {offsets = [0, 2, 1, 0], sizes = [1, 1, 1, 32], strides = [1, 1, 1, 1]} : vector<1x4x4x32xf32> to vector<1x1x1x32xf32>
    %65 = vector.extract_strided_slice %54 {offsets = [0, 2, 2, 0], sizes = [1, 1, 1, 32], strides = [1, 1, 1, 1]} : vector<1x4x4x32xf32> to vector<1x1x1x32xf32>
    %66 = vector.extract_strided_slice %54 {offsets = [0, 2, 3, 0], sizes = [1, 1, 1, 32], strides = [1, 1, 1, 1]} : vector<1x4x4x32xf32> to vector<1x1x1x32xf32>
    %67 = vector.extract_strided_slice %54 {offsets = [0, 3, 0, 0], sizes = [1, 1, 1, 32], strides = [1, 1, 1, 1]} : vector<1x4x4x32xf32> to vector<1x1x1x32xf32>
    %68 = vector.extract_strided_slice %54 {offsets = [0, 3, 1, 0], sizes = [1, 1, 1, 32], strides = [1, 1, 1, 1]} : vector<1x4x4x32xf32> to vector<1x1x1x32xf32>
    %69 = vector.extract_strided_slice %54 {offsets = [0, 3, 2, 0], sizes = [1, 1, 1, 32], strides = [1, 1, 1, 1]} : vector<1x4x4x32xf32> to vector<1x1x1x32xf32>
    %70 = vector.extract_strided_slice %54 {offsets = [0, 3, 3, 0], sizes = [1, 1, 1, 32], strides = [1, 1, 1, 1]} : vector<1x4x4x32xf32> to vector<1x1x1x32xf32>
    %71 = tpu.concatenate %55, %56, %57, %58, %59, %60, %61, %62, %63, %64, %65, %66, %67, %68, %69, %70 in 3 : vector<1x1x1x32xf32>, vector<1x1x1x32xf32>, vector<1x1x1x32xf32>, vector<1x1x1x32xf32>, vector<1x1x1x32xf32>, vector<1x1x1x32xf32>, vector<1x1x1x32xf32>, vector<1x1x1x32xf32>, vector<1x1x1x32xf32>, vector<1x1x1x32xf32>, vector<1x1x1x32xf32>, vector<1x1x1x32xf32>, vector<1x1x1x32xf32>, vector<1x1x1x32xf32>, vector<1x1x1x32xf32>, vector<1x1x1x32xf32> -> vector<1x1x1x512xf32>
    %72 = vector.shape_cast %71 : vector<1x1x1x512xf32> to vector<1x512xf32>
    %73 = arith.truncf %72 : vector<1x512xf32> to vector<1x512xbf16>
    %c0_110 = arith.constant 0 : index
    %c0_111 = arith.constant 0 : index
    %74 = vector.load %arg6[%c0_110, %c0_111] : memref<512x128xbf16, #tpu.memory_space<vmem>>, vector<512x128xbf16>
    %cst_112 = arith.constant dense<0.000000e+00> : vector<1x128xf32>
    %75 = tpu.matmul %73, %74, %cst_112 {dimension_numbers = #tpu.dot_dimension_numbers<[1], [0], [0], [1], [0, 0, 1, 1], [], []>} : vector<1x512xbf16>, vector<512x128xbf16>, vector<1x128xf32> -> vector<1x128xf32>
    %c0_113 = arith.constant 0 : index
    %c0_114 = arith.constant 0 : index
    %76 = vector.load %arg7[%c0_113, %c0_114] : memref<1x128xf32, #tpu.memory_space<vmem>>, vector<1x128xf32>
    %77 = arith.addf %75, %76 : vector<1x128xf32>
    %78 = vector.shape_cast %77 : vector<1x128xf32> to vector<1x1x128xf32>
    %c0_115 = arith.constant 0 : index
    %c0_116 = arith.constant 0 : index
    %c0_117 = arith.constant 0 : index
    %79 = vector.load %arg8[%c0_115, %c0_116, %c0_117] : memref<1x1x128xf32, #tpu.memory_space<vmem>>, vector<1x1x128xf32>
    tpu.vector_store %arg8[%c0_115, %c0_116, %c0_117], %78 {strides = array<i32>} : memref<1x1x128xf32, #tpu.memory_space<vmem>>, vector<1x1x128xf32>,
    return
  }
  func.func @transform_0(%arg0: i32) -> (i32, i32, i32) {
    %c0_i32 = arith.constant 0 : i32
    %c0_i32_0 = arith.constant 0 : i32
    %c0_i32_1 = arith.constant 0 : i32
    return %arg0, %c0_i32, %c0_i32_0 : i32, i32, i32
  }
  func.func @transform_1(%arg0: i32) -> (i32, i32) {
    %c0_i32 = arith.constant 0 : i32
    %c0_i32_0 = arith.constant 0 : i32
    %c0_i32_1 = arith.constant 0 : i32
    return %c0_i32, %c0_i32_0 : i32, i32
  }
  func.func @transform_2(%arg0: i32) -> (i32, i32) {
    %c0_i32 = arith.constant 0 : i32
    %c0_i32_0 = arith.constant 0 : i32
    %c0_i32_1 = arith.constant 0 : i32
    return %c0_i32, %c0_i32_0 : i32, i32
  }
  func.func @transform_3(%arg0: i32) -> (i32, i32) {
    %c0_i32 = arith.constant 0 : i32
    %c0_i32_0 = arith.constant 0 : i32
    %c0_i32_1 = arith.constant 0 : i32
    return %c0_i32, %c0_i32_0 : i32, i32
  }
  func.func @transform_4(%arg0: i32) -> (i32, i32) {
    %c0_i32 = arith.constant 0 : i32
    %c0_i32_0 = arith.constant 0 : i32
    %c0_i32_1 = arith.constant 0 : i32
    return %c0_i32, %c0_i32_0 : i32, i32
  }
  func.func @transform_5(%arg0: i32) -> (i32, i32) {
    %c0_i32 = arith.constant 0 : i32
    %c0_i32_0 = arith.constant 0 : i32
    %c0_i32_1 = arith.constant 0 : i32
    return %c0_i32, %c0_i32_0 : i32, i32
  }
  func.func @transform_6(%arg0: i32) -> (i32, i32) {
    %c0_i32 = arith.constant 0 : i32
    %c0_i32_0 = arith.constant 0 : i32
    %c0_i32_1 = arith.constant 0 : i32
    return %c0_i32, %c0_i32_0 : i32, i32
  }
  func.func @transform_7(%arg0: i32) -> (i32, i32, i32) {
    %c0_i32 = arith.constant 0 : i32
    %c0_i32_0 = arith.constant 0 : i32
    %c0_i32_1 = arith.constant 0 : i32
    return %arg0, %c0_i32, %c0_i32_0 : i32, i32, i32
  }
}

</mosaic_0001>

<llo_original>
// kernel: baseline_forward.1
$region0: #{baseline_forward.1}
  #allocation0 [shape = 'u32[]', space=smem, size = 0x4, offset = 0x4, fixed_abs, tag = 'smem constant byte address 0x4 - core index']
  #allocation1 [shape = 'u32[144,128]{1,0:T(1,128)}', space=vmem, size = 0x12000, scoped, tag = 'internal scratch']
  #allocation2 [shape = 'f32[1,16,16,32]{3,2,1,0:T(8,128)}', space=vmem, size = 0x20000, scoped, tag = 'scratch operand']
  #allocation3 [shape = 'f32[1,10,10,32]{3,2,1,0:T(8,128)}', space=vmem, size = 0x14000, scoped, tag = 'scratch operand']
  #allocation4 [shape = 'f32[1,8,8,32]{3,2,1,0:T(8,128)}', space=vmem, size = 0x8000, scoped, tag = 'scratch operand']
  %s0 = inlined_call_operand.vmem [shape: bf16[2,256,36], index: 0, kind: input, shape index: {}]
  %s1 = inlined_call_operand.vmem [shape: bf16[36,32], index: 1, kind: input, shape index: {}]
  %s2 = inlined_call_operand.vmem [shape: f32[1,32], index: 2, kind: input, shape index: {}]
  %s3 = inlined_call_operand.vmem [shape: bf16[288,32], index: 3, kind: input, shape index: {}]
  %s4 = inlined_call_operand.vmem [shape: f32[1,32], index: 4, kind: input, shape index: {}]
  %s5 = inlined_call_operand.vmem [shape: bf16[512,128], index: 5, kind: input, shape index: {}]
  %s6 = inlined_call_operand.vmem [shape: f32[1,128], index: 6, kind: input, shape index: {}]
  %s7 = inlined_call_operand.hbm [shape: f32[2,1,128], index: 7, kind: output, shape index: {}]
  %s8 = sld [smem:[#allocation0]]
  $region61: #{baseline_forward.1} parent=0
    _
  %s10 = ssub.s32 1, %s8
  %s11 = scalar_select 0, %s10, %s8
  $region1: #{baseline_forward.1} parent=0
    #allocation5 [shape = 'u8[1024]{0}', space=vmem, size = 0x400, scoped, tag = 'output window, operand 0']
    #allocation6 [shape = 's32[2]{0}', space=sflag, size = 0x8, scoped, tag = 'scoped memory for baseline_forward.1']
    %12 = vsyncpa [#allocation6], 0
    %s13 = scalar_lea.sflag [#allocation6], 1
    %14 = vsyncpa %s13, 0
    loop: start=0, step=1, limit=4
    $region2: #{baseline_forward.1} parent=1 // loop_pre_header
      _
    $region3: #{baseline_forward.1} parent=1 // loop_header
      %s16 = sphi 0, %s20
      %p17 = scmp.ge.s32.totalorder %s16, 4
      %s26 = sphi 0, %s28
      %s29 = sphi 0, %s26
      %s30 = sphi 0, %s29
      %s46 = sphi 0, %s30
      %s50 = sphi 0, %s50
      %s52 = sphi 0, %s50
      %s53 = sphi 0, %s52
      %s67 = sphi 0, %s53
      %s71 = sphi 0, %s71
      %s73 = sphi 0, %s71
      %s74 = sphi 0, %s73
      %s88 = sphi 0, %s74
      %s92 = sphi 0, %s92
      %s94 = sphi 0, %s92
      %s95 = sphi 0, %s94
      %s109 = sphi 0, %s95
      %s113 = sphi 0, %s113
      %s115 = sphi 0, %s113
      %s116 = sphi 0, %s115
      %s130 = sphi 0, %s116
      %s134 = sphi 0, %s134
      %s136 = sphi 0, %s134
      %s137 = sphi 0, %s136
      %s151 = sphi 0, %s137
      %s155 = sphi 0, %s155
      %s157 = sphi 0, %s155
      %s158 = sphi 0, %s157
      %s172 = sphi 0, %s158
      %s178 = sphi 0, %s180
      %s181 = sphi 0, %s178
      %s182 = sphi 0, %s181
      %s198 = sphi 0, %s182
    $region4: #{baseline_forward.1} parent=1 // loop_header_branch
      %19 = sbr.rel (%p17) target = $region8
    $region5: #{baseline_forward.1} parent=1 // loop_body
      %s21 = ssub.s32 %s16, 1
      %s22 = ssub.s32 %s16, 2
      %s23 = sadd.s32 %s16, 1
      %s24 = ssub.s32 %s16, %s23
      %p25 = scmp.eq.s32.totalorder %s24, 0
      %s27 = sadd.s32 %s26, 1
      %s28 = scalar_select %p25, %s26, %s27
      %p31 = pneg %p25
      %p32 = scmp.eq.s32.totalorder %s16, 1
      %p33 = por %p31, %p32
      %p34 = scmp.ne.s32.totalorder %s26, %s29
      %p35 = scmp.eq.s32.totalorder %s16, 0
      %p36 = por %p34, %p35
      %p37 = scmp.ne.s32.totalorder %s26, %s29
      %p38 = scmp.eq.s32.totalorder %s21, 1
      %p39 = por %p37, %p38
      %p40 = scmp.ne.s32.totalorder %s29, %s30
      %p41 = scmp.eq.s32.totalorder %s21, 0
      %p42 = por %p40, %p41
      %p43 = scmp.ne.s32.totalorder %s29, %s30
      %p44 = scmp.eq.s32.totalorder %s22, 1
      %p45 = por %p43, %p44
      %p47 = scmp.ne.s32.totalorder %s30, %s46
      %p48 = scmp.eq.s32.totalorder %s22, 0
      %p49 = por %p47, %p48
      %s51 = sadd.s32 %s50, 1
      %p54 = scmp.eq.s32.totalorder %s16, 1
      %p55 = scmp.ne.s32.totalorder %s50, %s52
      %p56 = scmp.eq.s32.totalorder %s16, 0
      %p57 = por %p55, %p56
      %p58 = scmp.ne.s32.totalorder %s50, %s52
      %p59 = scmp.eq.s32.totalorder %s21, 1
      %p60 = por %p58, %p59
      %p61 = scmp.ne.s32.totalorder %s52, %s53
      %p62 = scmp.eq.s32.totalorder %s21, 0
      %p63 = por %p61, %p62
      %p64 = scmp.ne.s32.totalorder %s52, %s53
      %p65 = scmp.eq.s32.totalorder %s22, 1
      %p66 = por %p64, %p65
      %p68 = scmp.ne.s32.totalorder %s53, %s67
      %p69 = scmp.eq.s32.totalorder %s22, 0
      %p70 = por %p68, %p69
      %s72 = sadd.s32 %s71, 1
      %p75 = scmp.eq.s32.totalorder %s16, 1
      %p76 = scmp.ne.s32.totalorder %s71, %s73
      %p77 = scmp.eq.s32.totalorder %s16, 0
      %p78 = por %p76, %p77
      %p79 = scmp.ne.s32.totalorder %s71, %s73
      %p80 = scmp.eq.s32.totalorder %s21, 1
      %p81 = por %p79, %p80
      %p82 = scmp.ne.s32.totalorder %s73, %s74
      %p83 = scmp.eq.s32.totalorder %s21, 0
      %p84 = por %p82, %p83
      %p85 = scmp.ne.s32.totalorder %s73, %s74
      %p86 = scmp.eq.s32.totalorder %s22, 1
      %p87 = por %p85, %p86
      %p89 = scmp.ne.s32.totalorder %s74, %s88
      %p90 = scmp.eq.s32.totalorder %s22, 0
      %p91 = por %p89, %p90
      %s93 = sadd.s32 %s92, 1
      %p96 = scmp.eq.s32.totalorder %s16, 1
      %p97 = scmp.ne.s32.totalorder %s92, %s94
      %p98 = scmp.eq.s32.totalorder %s16, 0
      %p99 = por %p97, %p98
      %p100 = scmp.ne.s32.totalorder %s92, %s94
      %p101 = scmp.eq.s32.totalorder %s21, 1
      %p102 = por %p100, %p101
      %p103 = scmp.ne.s32.totalorder %s94, %s95
      %p104 = scmp.eq.s32.totalorder %s21, 0
      %p105 = por %p103, %p104
      %p106 = scmp.ne.s32.totalorder %s94, %s95
      %p107 = scmp.eq.s32.totalorder %s22, 1
      %p108 = por %p106, %p107
      %p110 = scmp.ne.s32.totalorder %s95, %s109
      %p111 = scmp.eq.s32.totalorder %s22, 0
      %p112 = por %p110, %p111
      %s114 = sadd.s32 %s113, 1
      %p117 = scmp.eq.s32.totalorder %s16, 1
      %p118 = scmp.ne.s32.totalorder %s113, %s115
      %p119 = scmp.eq.s32.totalorder %s16, 0
      %p120 = por %p118, %p119
      %p121 = scmp.ne.s32.totalorder %s113, %s115
      %p122 = scmp.eq.s32.totalorder %s21, 1
      %p123 = por %p121, %p122
      %p124 = scmp.ne.s32.totalorder %s115, %s116
      %p125 = scmp.eq.s32.totalorder %s21, 0
      %p126 = por %p124, %p125
      %p127 = scmp.ne.s32.totalorder %s115, %s116
      %p128 = scmp.eq.s32.totalorder %s22, 1
      %p129 = por %p127, %p128
      %p131 = scmp.ne.s32.totalorder %s116, %s130
      %p132 = scmp.eq.s32.totalorder %s22, 0
      %p133 = por %p131, %p132
      %s135 = sadd.s32 %s134, 1
      %p138 = scmp.eq.s32.totalorder %s16, 1
      %p139 = scmp.ne.s32.totalorder %s134, %s136
      %p140 = scmp.eq.s32.totalorder %s16, 0
      %p141 = por %p139, %p140
      %p142 = scmp.ne.s32.totalorder %s134, %s136
      %p143 = scmp.eq.s32.totalorder %s21, 1
      %p144 = por %p142, %p143
      %p145 = scmp.ne.s32.totalorder %s136, %s137
      %p146 = scmp.eq.s32.totalorder %s21, 0
      %p147 = por %p145, %p146
      %p148 = scmp.ne.s32.totalorder %s136, %s137
      %p149 = scmp.eq.s32.totalorder %s22, 1
      %p150 = por %p148, %p149
      %p152 = scmp.ne.s32.totalorder %s137, %s151
      %p153 = scmp.eq.s32.totalorder %s22, 0
      %p154 = por %p152, %p153
      %s156 = sadd.s32 %s155, 1
      %p159 = scmp.eq.s32.totalorder %s16, 1
      %p160 = scmp.ne.s32.totalorder %s155, %s157
      %p161 = scmp.eq.s32.totalorder %s16, 0
      %p162 = por %p160, %p161
      %p163 = scmp.ne.s32.totalorder %s155, %s157
      %p164 = scmp.eq.s32.totalorder %s21, 1
      %p165 = por %p163, %p164
      %p166 = scmp.ne.s32.totalorder %s157, %s158
      %p167 = scmp.eq.s32.totalorder %s21, 0
      %p168 = por %p166, %p167
      %p169 = scmp.ne.s32.totalorder %s157, %s158
      %p170 = scmp.eq.s32.totalorder %s22, 1
      %p171 = por %p169, %p170
      %p173 = scmp.ne.s32.totalorder %s158, %s172
      %p174 = scmp.eq.s32.totalorder %s22, 0
      %p175 = por %p173, %p174
      %s176 = ssub.s32 %s16, %s23
      %p177 = scmp.eq.s32.totalorder %s176, 0
      %s179 = sadd.s32 %s178, 1
      %s180 = scalar_select %p177, %s178, %s179
      %p183 = pneg %p177
      %p184 = scmp.eq.s32.totalorder %s16, 1
      %p185 = por %p183, %p184
      %p186 = scmp.ne.s32.totalorder %s178, %s181
      %p187 = scmp.eq.s32.totalorder %s16, 0
      %p188 = por %p186, %p187
      %p189 = scmp.ne.s32.totalorder %s178, %s181
      %p190 = scmp.eq.s32.totalorder %s21, 1
      %p191 = por %p189, %p190
      %p192 = scmp.ne.s32.totalorder %s181, %s182
      %p193 = scmp.eq.s32.totalorder %s21, 0
      %p194 = por %p192, %p193
      %p195 = scmp.ne.s32.totalorder %s181, %s182
      %p196 = scmp.eq.s32.totalorder %s22, 1
      %p197 = por %p195, %p196
      %p199 = scmp.ne.s32.totalorder %s182, %s198
      %p200 = scmp.eq.s32.totalorder %s22, 0
      %p201 = por %p199, %p200
      %p202 = scmp.le.s32.totalorder 1, %s16
      %p203 = scmp.lt.s32.totalorder %s16, 3
      %p204 = pnand %p202, %p203
      %p205 = pneg %p204
      // Predicated region
      $region9: #{baseline_forward.1} parent=5 // pred_check
        _
      $region10: #{baseline_forward.1} parent=5 // pred_check_branch
        %207 = sbr.rel (%p204) target = $region12
      $region11: #{baseline_forward.1} parent=5 // pred_region
        %s208 = ssub.s32 %s16, 1
        // Predicated region
        $region13: #{baseline_forward.1} parent=11 // pred_check
          %p209 = pneg %p63
        $region14: #{baseline_forward.1} parent=11 // pred_check_branch
          %211 = sbr.rel (%p209) target = $region16
        $region15: #{baseline_forward.1} parent=11 // pred_region
          _
        $region16: #{baseline_forward.1} parent=11 // pred_fallthru
          _
        // Predicated region
        $region17: #{baseline_forward.1} parent=11 // pred_check
          %p212 = pneg %p84
        $region18: #{baseline_forward.1} parent=11 // pred_check_branch
          %214 = sbr.rel (%p212) target = $region20
        $region19: #{baseline_forward.1} parent=11 // pred_region
          _
        $region20: #{baseline_forward.1} parent=11 // pred_fallthru
          _
        // Predicated region
        $region21: #{baseline_forward.1} parent=11 // pred_check
          %p215 = pneg %p105
        $region22: #{baseline_forward.1} parent=11 // pred_check_branch
          %217 = sbr.rel (%p215) target = $region24
        $region23: #{baseline_forward.1} parent=11 // pred_region
          _
        $region24: #{baseline_forward.1} parent=11 // pred_fallthru
          _
        // Predicated region
        $region25: #{baseline_forward.1} parent=11 // pred_check
          %p218 = pneg %p126
        $region26: #{baseline_forward.1} parent=11 // pred_check_branch
          %220 = sbr.rel (%p218) target = $region28
        $region27: #{baseline_forward.1} parent=11 // pred_region
          _
        $region28: #{baseline_forward.1} parent=11 // pred_fallthru
          _
        // Predicated region
        $region29: #{baseline_forward.1} parent=11 // pred_check
          %p221 = pneg %p147
        $region30: #{baseline_forward.1} parent=11 // pred_check_branch
          %223 = sbr.rel (%p221) target = $region32
        $region31: #{baseline_forward.1} parent=11 // pred_region
          _
        $region32: #{baseline_forward.1} parent=11 // pred_fallthru
          _
        // Predicated region
        $region33: #{baseline_forward.1} parent=11 // pred_check
          %p224 = pneg %p168
        $region34: #{baseline_forward.1} parent=11 // pred_check_branch
          %226 = sbr.rel (%p224) target = $region36
        $region35: #{baseline_forward.1} parent=11 // pred_region
          _
        $region36: #{baseline_forward.1} parent=11 // pred_fallthru
          _
      $region12: #{baseline_forward.1} parent=5 // pred_fallthru
        _
      %p227 = scmp.lt.s32.totalorder %s16, 2
      // Predicated region
      $region37: #{baseline_forward.1} parent=5 // pred_check
        %p228 = pneg %p227
      $region38: #{baseline_forward.1} parent=5 // pred_check_branch
        %230 = sbr.rel (%p228) target = $region40
      $region39: #{baseline_forward.1} parent=5 // pred_region
        // Predicated region
        $region41: #{baseline_forward.1} parent=39 // pred_check
          %p231 = pneg %p36
        $region42: #{baseline_forward.1} parent=39 // pred_check_branch
          %233 = sbr.rel (%p231) target = $region44
        $region43: #{baseline_forward.1} parent=39 // pred_region
          %p234 = scmp.lt.s32.totalorder %s16, 1
          %s235 = scalar_select %p234, %s16, 1
          %s236 = smul.addr %s235, 32
          %s237 = smul.addr %s236, 4
          %s238 = scalar_lea.vmem %s0, %s237
        $region44: #{baseline_forward.1} parent=39 // pred_fallthru
          _
      $region40: #{baseline_forward.1} parent=5 // pred_fallthru
        _
      %p239 = scmp.le.s32.totalorder 1, %s16
      %p240 = scmp.lt.s32.totalorder %s16, 3
      %p241 = pnand %p239, %p240
      %p242 = pneg %p241
      // Predicated region
      $region45: #{baseline_forward.1} parent=5 // pred_check
        _
      $region46: #{baseline_forward.1} parent=5 // pred_check_branch
        %244 = sbr.rel (%p241) target = $region48
      $region47: #{baseline_forward.1} parent=5 // pred_region
        %s245 = ssub.s32 %s16, 1
        %p246 = scmp.lt.s32.totalorder %s21, 1
        %s247 = scalar_select %p246, %s21, 1
        %s248 = smul.addr %s247, 32
        %s249 = smul.addr %s248, 4
        %s250 = scalar_lea.vmem %s0, %s249
        %p251 = pneg %p42
        %p252 = pneg %p39
        %p253 = pneg %p63
        %p254 = pneg %p60
        %p255 = pneg %p84
        %p256 = pneg %p81
        %p257 = pneg %p105
        %p258 = pneg %p102
        %p259 = pneg %p126
        %p260 = pneg %p123
        %p261 = pneg %p147
        %p262 = pneg %p144
        %p263 = pneg %p168
        %p264 = pneg %p165
        %p265 = pneg %p194
        %p266 = pneg %p191
        %s267 = sand.u32 %s181, 1
        %s268 = scalar_lea.sflag [#allocation6], %s267
        %s269 = sand.u32 %s181, 1
        %s270 = scalar_lea.vmem [#allocation5], %s269
        %p271 = scmp.lt.s32.totalorder %s21, 1
        %s272 = scalar_select %p271, %s21, 1
        %s273 = smul.addr %s272, 32
        %s274 = smul.addr %s273, 4
        %s275 = scalar_lea.vmem %s0, %s274
        %v277 = vld [vmem:[%s275] sm:$0xf]
        %v278 = vld [vmem:[%s275 + $0x4] sm:$0xf]
        %v279 = vld [vmem:[%s275 + $0x8] sm:$0xf]
        %v280 = vld [vmem:[%s275 + $0xc] sm:$0xf]
        %v281 = vld [vmem:[%s275 + $0x10] sm:$0xf]
        %v282 = vld [vmem:[%s275 + $0x14] sm:$0xf]
        %v283 = vld [vmem:[%s275 + $0x18] sm:$0xf]
        %v284 = vld [vmem:[%s275 + $0x1c] sm:$0xf]
        %v285 = vld [vmem:[%s275 + $0x20] sm:$0xf]
        %v286 = vld [vmem:[%s275 + $0x24] sm:$0xf]
        %v287 = vld [vmem:[%s275 + $0x28] sm:$0xf]
        %v288 = vld [vmem:[%s275 + $0x2c] sm:$0xf]
        %v289 = vld [vmem:[%s275 + $0x30] sm:$0xf]
        %v290 = vld [vmem:[%s275 + $0x34] sm:$0xf]
        %v291 = vld [vmem:[%s275 + $0x38] sm:$0xf]
        %v292 = vld [vmem:[%s275 + $0x3c] sm:$0xf]
        %v293 = vld [vmem:[%s275 + $0x40] sm:$0xf]
        %v294 = vld [vmem:[%s275 + $0x44] sm:$0xf]
        %v295 = vld [vmem:[%s275 + $0x48] sm:$0xf]
        %v296 = vld [vmem:[%s275 + $0x4c] sm:$0xf]
        %v297 = vld [vmem:[%s275 + $0x50] sm:$0xf]
        %v298 = vld [vmem:[%s275 + $0x54] sm:$0xf]
        %v299 = vld [vmem:[%s275 + $0x58] sm:$0xf]
        %v300 = vld [vmem:[%s275 + $0x5c] sm:$0xf]
        %v301 = vld [vmem:[%s275 + $0x60] sm:$0xf]
        %v302 = vld [vmem:[%s275 + $0x64] sm:$0xf]
        %v303 = vld [vmem:[%s275 + $0x68] sm:$0xf]
        %v304 = vld [vmem:[%s275 + $0x6c] sm:$0xf]
        %v305 = vld [vmem:[%s275 + $0x70] sm:$0xf]
        %v306 = vld [vmem:[%s275 + $0x74] sm:$0xf]
        %v307 = vld [vmem:[%s275 + $0x78] sm:$0xf]
        %v308 = vld [vmem:[%s275 + $0x7c] sm:$0xf]
        %v309 = vld [vmem:[%s1] sm:$0xf]
        %v310 = vld [vmem:[%s1 + $0x4] sm:$0xf]
        %v311 = vld [vmem:[%s1 + $0x8] sm:$0xf]
        %v312 = vld [vmem:[%s1 + $0xc] sm:$0xf]
        %v313 = vld [vmem:[%s1 + $0x10] sm:$0x3]
        %v314 = vld [vmem:[%s2] sm:$0x1]
        %v316 = vlaneseq
        %v317 = vshrl.u32 %v316, 7
        %v318 = vsub.s32 0, %v317
        %v319 = vrot.slane %v314, %v318
        %v353 = vunpack.c.l.b16 %v277
        %v354 = vunpack.c.l.b16 %v278
        %v355 = vunpack.c.l.b16 %v279
        %v356 = vunpack.c.l.b16 %v280
        %v357 = vunpack.c.l.b16 %v281
        %v358 = vunpack.c.l.b16 %v282
        %v359 = vunpack.c.l.b16 %v283
        %v360 = vunpack.c.l.b16 %v284
        %v361 = vunpack.c.l.b16 %v285
        %v362 = vunpack.c.l.b16 %v286
        %v363 = vunpack.c.l.b16 %v287
        %v364 = vunpack.c.l.b16 %v288
        %v365 = vunpack.c.l.b16 %v289
        %v366 = vunpack.c.l.b16 %v290
        %v367 = vunpack.c.l.b16 %v291
        %v368 = vunpack.c.l.b16 %v292
        %v369 = vunpack.c.l.b16 %v293
        %v370 = vunpack.c.l.b16 %v294
        %v371 = vunpack.c.l.b16 %v295
        %v372 = vunpack.c.l.b16 %v296
        %v373 = vunpack.c.l.b16 %v297
        %v374 = vunpack.c.l.b16 %v298
        %v375 = vunpack.c.l.b16 %v299
        %v376 = vunpack.c.l.b16 %v300
        %v377 = vunpack.c.l.b16 %v301
        %v378 = vunpack.c.l.b16 %v302
        %v379 = vunpack.c.l.b16 %v303
        %v380 = vunpack.c.l.b16 %v304
        %v381 = vunpack.c.l.b16 %v305
        %v382 = vunpack.c.l.b16 %v306
        %v383 = vunpack.c.l.b16 %v307
        %v384 = vunpack.c.l.b16 %v308
        %v385 = vpack.c.b16 %v354, %v353
        %v386 = vpack.c.b16 %v356, %v355
        %v387 = vpack.c.b16 %v358, %v357
        %v388 = vpack.c.b16 %v360, %v359
        %v389 = vpack.c.b16 %v362, %v361
        %v390 = vpack.c.b16 %v364, %v363
        %v391 = vpack.c.b16 %v366, %v365
        %v392 = vpack.c.b16 %v368, %v367
        %v393 = vpack.c.b16 %v370, %v369
        %v394 = vpack.c.b16 %v372, %v371
        %v395 = vpack.c.b16 %v374, %v373
        %v396 = vpack.c.b16 %v376, %v375
        %v397 = vpack.c.b16 %v378, %v377
        %v398 = vpack.c.b16 %v380, %v379
        %v399 = vpack.c.b16 %v382, %v381
        %v400 = vpack.c.b16 %v384, %v383
        %v406 = vunpack.c.l.b16 %v309
        %v407 = vunpack.c.l.b16 %v310
        %v408 = vunpack.c.l.b16 %v311
        %v409 = vunpack.c.l.b16 %v312
        %v410 = vunpack.c.l.b16 %v313
        %v411 = vpack.c.b16 %v407, %v406
        %v412 = vpack.c.b16 %v409, %v408
        %v413 = vpack.c.b16 %v410, %v410
        %vm416 = vcmask 293888
        %v418 = vsel %vm416, %v385, 0
        %v421 = vsel %vm416, %v386, 0
        %v424 = vsel %vm416, %v387, 0
        %v427 = vsel %vm416, %v388, 0
        %v430 = vsel %vm416, %v389, 0
        %v433 = vsel %vm416, %v390, 0
        %v436 = vsel %vm416, %v391, 0
        %v439 = vsel %vm416, %v392, 0
        %v442 = vsel %vm416, %v393, 0
        %v445 = vsel %vm416, %v394, 0
        %v448 = vsel %vm416, %v395, 0
        %v451 = vsel %vm416, %v396, 0
        %v454 = vsel %vm416, %v397, 0
        %v457 = vsel %vm416, %v398, 0
        %v460 = vsel %vm416, %v399, 0
        %v463 = vsel %vm416, %v400, 0
        %vm465 = vcmask 1041408
        %v467 = vsel %vm465, %v413, 0
        %469 = vmatprep.subr.bf16.mxu0 0
        %470 = vmatpush1.bf16.msra.mxu0 %v411
        %471 = vmatprep.subr.bf16.mxu0 0
        %472 = vmatpush1.bf16.msra.mxu0 %v412
        %473 = vmatprep.subr.bf16.mxu0 0
        %474 = vmatpush1.bf16.msra.mxu0 %v467
        %475 = vmatprep.subr.bf16.mxu0 0
        %476 = vmatpush1.bf16.msra.mxu0 0
        %477 = vmatprep.subr.bf16.mxu0 0
        %478 = vmatpush1.bf16.msra.mxu0 0
        %479 = vmatprep.subr.bf16.mxu0 0
        %480 = vmatpush1.bf16.msra.mxu0 0
        %481 = vmatprep.subr.bf16.mxu0 0
        %482 = vmatpush1.bf16.msra.mxu0 0
        %483 = vmatprep.subr.bf16.mxu0 0
        %484 = vmatpush1.bf16.msra.mxu0 0
        %485 = vmatprep.subr.bf16.mxu0 0
        %486 = vmatpush1.bf16.msra.mxu0 0
        %487 = vmatprep.subr.bf16.mxu0 0
        %488 = vmatpush1.bf16.msra.mxu0 0
        %489 = vmatprep.subr.bf16.mxu0 0
        %490 = vmatpush1.bf16.msra.mxu0 0
        %491 = vmatprep.subr.bf16.mxu0 0
        %492 = vmatpush1.bf16.msra.mxu0 0
        %493 = vmatprep.subr.bf16.mxu0 0
        %494 = vmatpush1.bf16.msra.mxu0 0
        %495 = vmatprep.subr.bf16.mxu0 0
        %496 = vmatpush1.bf16.msra.mxu0 0
        %497 = vmatprep.subr.bf16.mxu0 0
        %498 = vmatpush1.bf16.msra.mxu0 0
        %499 = vmatprep.subr.bf16.mxu0 0
        %500 = vmatpush1.bf16.msra.mxu0 0
        %501 = vmatprep.mubr.bf16.mxu0 0
        %502 = vmatmul.mubr.bf16.gmra.mrb[0].mxu0 %v418
        %v503 = vpop.f32.mrb[0].mxu0
        %v504 = vadd.f32 %v319, %v503
        %v505 = vpop.f32.mrb[0].mxu0
        %v506 = vpop.f32.mrb[0].mxu0
        %v507 = vadd.f32 %v319, %v506
        %v508 = vpop.f32.mrb[0].mxu0
        %509 = vmatprep.mubr.bf16.mxu0 0
        %510 = vmatmul.mubr.bf16.gmra.mrb[0].mxu0 %v421
        %v511 = vpop.f32.mrb[0].mxu0
        %v512 = vadd.f32 %v319, %v511
        %v513 = vpop.f32.mrb[0].mxu0
        %v514 = vpop.f32.mrb[0].mxu0
        %v515 = vadd.f32 %v319, %v514
        %v516 = vpop.f32.mrb[0].mxu0
        %517 = vmatprep.mubr.bf16.mxu0 0
        %518 = vmatmul.mubr.bf16.gmra.mrb[0].mxu0 %v424
        %v519 = vpop.f32.mrb[0].mxu0
        %v520 = vadd.f32 %v319, %v519
        %v521 = vpop.f32.mrb[0].mxu0
        %v522 = vpop.f32.mrb[0].mxu0
        %v523 = vadd.f32 %v319, %v522
        %v524 = vpop.f32.mrb[0].mxu0
        %525 = vmatprep.mubr.bf16.mxu0 0
        %526 = vmatmul.mubr.bf16.gmra.mrb[0].mxu0 %v427
        %v527 = vpop.f32.mrb[0].mxu0
        %v528 = vadd.f32 %v319, %v527
        %v529 = vpop.f32.mrb[0].mxu0
        %v530 = vpop.f32.mrb[0].mxu0
        %v531 = vadd.f32 %v319, %v530
        %v532 = vpop.f32.mrb[0].mxu0
        %533 = vmatprep.mubr.bf16.mxu0 0
        %534 = vmatmul.mubr.bf16.gmra.mrb[0].mxu0 %v430
        %v535 = vpop.f32.mrb[0].mxu0
        %v536 = vadd.f32 %v319, %v535
        %v537 = vpop.f32.mrb[0].mxu0
        %v538 = vpop.f32.mrb[0].mxu0
        %v539 = vadd.f32 %v319, %v538
        %v540 = vpop.f32.mrb[0].mxu0
        %541 = vmatprep.mubr.bf16.mxu0 0
        %542 = vmatmul.mubr.bf16.gmra.mrb[0].mxu0 %v433
        %v543 = vpop.f32.mrb[0].mxu0
        %v544 = vadd.f32 %v319, %v543
        %v545 = vpop.f32.mrb[0].mxu0
        %v546 = vpop.f32.mrb[0].mxu0
        %v547 = vadd.f32 %v319, %v546
        %v548 = vpop.f32.mrb[0].mxu0
        %549 = vmatprep.mubr.bf16.mxu0 0
        %550 = vmatmul.mubr.bf16.gmra.mrb[0].mxu0 %v436
        %v551 = vpop.f32.mrb[0].mxu0
        %v552 = vadd.f32 %v319, %v551
        %v553 = vpop.f32.mrb[0].mxu0
        %v554 = vpop.f32.mrb[0].mxu0
        %v555 = vadd.f32 %v319, %v554
        %v556 = vpop.f32.mrb[0].mxu0
        %557 = vmatprep.mubr.bf16.mxu0 0
        %558 = vmatmul.mubr.bf16.gmra.mrb[0].mxu0 %v439
        %v559 = vpop.f32.mrb[0].mxu0
        %v560 = vadd.f32 %v319, %v559
        %v561 = vpop.f32.mrb[0].mxu0
        %v562 = vpop.f32.mrb[0].mxu0
        %v563 = vadd.f32 %v319, %v562
        %v564 = vpop.f32.mrb[0].mxu0
        %565 = vmatprep.mubr.bf16.mxu0 0
        %566 = vmatmul.mubr.bf16.gmra.mrb[0].mxu0 %v442
        %v567 = vpop.f32.mrb[0].mxu0
        %v568 = vadd.f32 %v319, %v567
        %v569 = vpop.f32.mrb[0].mxu0
        %v570 = vpop.f32.mrb[0].mxu0
        %v571 = vadd.f32 %v319, %v570
        %v572 = vpop.f32.mrb[0].mxu0
        %573 = vmatprep.mubr.bf16.mxu0 0
        %574 = vmatmul.mubr.bf16.gmra.mrb[0].mxu0 %v445
        %v575 = vpop.f32.mrb[0].mxu0
        %v576 = vadd.f32 %v319, %v575
        %v577 = vpop.f32.mrb[0].mxu0
        %v578 = vpop.f32.mrb[0].mxu0
        %v579 = vadd.f32 %v319, %v578
        %v580 = vpop.f32.mrb[0].mxu0
        %581 = vmatprep.mubr.bf16.mxu0 0
        %582 = vmatmul.mubr.bf16.gmra.mrb[0].mxu0 %v448
        %v583 = vpop.f32.mrb[0].mxu0
        %v584 = vadd.f32 %v319, %v583
        %v585 = vpop.f32.mrb[0].mxu0
        %v586 = vpop.f32.mrb[0].mxu0
        %v587 = vadd.f32 %v319, %v586
        %v588 = vpop.f32.mrb[0].mxu0
        %589 = vmatprep.mubr.bf16.mxu0 0
        %590 = vmatmul.mubr.bf16.gmra.mrb[0].mxu0 %v451
        %v591 = vpop.f32.mrb[0].mxu0
        %v592 = vadd.f32 %v319, %v591
        %v593 = vpop.f32.mrb[0].mxu0
        %v594 = vpop.f32.mrb[0].mxu0
        %v595 = vadd.f32 %v319, %v594
        %v596 = vpop.f32.mrb[0].mxu0
        %597 = vmatprep.mubr.bf16.mxu0 0
        %598 = vmatmul.mubr.bf16.gmra.mrb[0].mxu0 %v454
        %v599 = vpop.f32.mrb[0].mxu0
        %v600 = vadd.f32 %v319, %v599
        %v601 = vpop.f32.mrb[0].mxu0
        %v602 = vpop.f32.mrb[0].mxu0
        %v603 = vadd.f32 %v319, %v602
        %v604 = vpop.f32.mrb[0].mxu0
        %605 = vmatprep.mubr.bf16.mxu0 0
        %606 = vmatmul.mubr.bf16.gmra.mrb[0].mxu0 %v457
        %v607 = vpop.f32.mrb[0].mxu0
        %v608 = vadd.f32 %v319, %v607
        %v609 = vpop.f32.mrb[0].mxu0
        %v610 = vpop.f32.mrb[0].mxu0
        %v611 = vadd.f32 %v319, %v610
        %v612 = vpop.f32.mrb[0].mxu0
        %613 = vmatprep.mubr.bf16.mxu0 0
        %614 = vmatmul.mubr.bf16.gmra.mrb[0].mxu0 %v460
        %v615 = vpop.f32.mrb[0].mxu0
        %v616 = vadd.f32 %v319, %v615
        %v617 = vpop.f32.mrb[0].mxu0
        %v618 = vpop.f32.mrb[0].mxu0
        %v619 = vadd.f32 %v319, %v618
        %v620 = vpop.f32.mrb[0].mxu0
        %621 = vmatprep.mubr.bf16.mxu0 0
        %622 = vmatmul.mubr.bf16.gmra.mrb[0].mxu0 %v463
        %v623 = vpop.f32.mrb[0].mxu0
        %v624 = vadd.f32 %v319, %v623
        %v625 = vpop.f32.mrb[0].mxu0
        %v626 = vpop.f32.mrb[0].mxu0
        %v627 = vadd.f32 %v319, %v626
        %v628 = vpop.f32.mrb[0].mxu0
        %629 = vdwg.mxu0
        %v630 = vmax.f32 %v504, 0.0
        %v631 = vmax.f32 %v507, 0.0
        %v632 = vmax.f32 %v512, 0.0
        %v633 = vmax.f32 %v515, 0.0
        %v634 = vmax.f32 %v520, 0.0
        %v635 = vmax.f32 %v523, 0.0
        %v636 = vmax.f32 %v528, 0.0
        %v637 = vmax.f32 %v531, 0.0
        %v638 = vmax.f32 %v536, 0.0
        %v639 = vmax.f32 %v539, 0.0
        %v640 = vmax.f32 %v544, 0.0
        %v641 = vmax.f32 %v547, 0.0
        %v642 = vmax.f32 %v552, 0.0
        %v643 = vmax.f32 %v555, 0.0
        %v644 = vmax.f32 %v560, 0.0
        %v645 = vmax.f32 %v563, 0.0
        %v646 = vmax.f32 %v568, 0.0
        %v647 = vmax.f32 %v571, 0.0
        %v648 = vmax.f32 %v576, 0.0
        %v649 = vmax.f32 %v579, 0.0
        %v650 = vmax.f32 %v584, 0.0
        %v651 = vmax.f32 %v587, 0.0
        %v652 = vmax.f32 %v592, 0.0
        %v653 = vmax.f32 %v595, 0.0
        %v654 = vmax.f32 %v600, 0.0
        %v655 = vmax.f32 %v603, 0.0
        %v656 = vmax.f32 %v608, 0.0
        %v657 = vmax.f32 %v611, 0.0
        %v658 = vmax.f32 %v616, 0.0
        %v659 = vmax.f32 %v619, 0.0
        %v660 = vmax.f32 %v624, 0.0
        %v661 = vmax.f32 %v627, 0.0
        %vm662 = vcmask 261120
        %663 = vst.msk [vmem:[#allocation2] sm:$0xff] %vm662, %v630
        %664 = vst.msk [vmem:[#allocation2 + $0x8] sm:$0xff] %vm662, %v631
        %665 = vst.msk [vmem:[#allocation2 + $0x10] sm:$0xff] %vm662, %v632
        %666 = vst.msk [vmem:[#allocation2 + $0x18] sm:$0xff] %vm662, %v633
        %667 = vst.msk [vmem:[#allocation2 + $0x20] sm:$0xff] %vm662, %v634
        %668 = vst.msk [vmem:[#allocation2 + $0x28] sm:$0xff] %vm662, %v635
        %669 = vst.msk [vmem:[#allocation2 + $0x30] sm:$0xff] %vm662, %v636
        %670 = vst.msk [vmem:[#allocation2 + $0x38] sm:$0xff] %vm662, %v637
        %671 = vst.msk [vmem:[#allocation2 + $0x40] sm:$0xff] %vm662, %v638
        %672 = vst.msk [vmem:[#allocation2 + $0x48] sm:$0xff] %vm662, %v639
        %673 = vst.msk [vmem:[#allocation2 + $0x50] sm:$0xff] %vm662, %v640
        %674 = vst.msk [vmem:[#allocation2 + $0x58] sm:$0xff] %vm662, %v641
        %675 = vst.msk [vmem:[#allocation2 + $0x60] sm:$0xff] %vm662, %v642
        %676 = vst.msk [vmem:[#allocation2 + $0x68] sm:$0xff] %vm662, %v643
        %677 = vst.msk [vmem:[#allocation2 + $0x70] sm:$0xff] %vm662, %v644
        %678 = vst.msk [vmem:[#allocation2 + $0x78] sm:$0xff] %vm662, %v645
        %679 = vst.msk [vmem:[#allocation2 + $0x80] sm:$0xff] %vm662, %v646
        %680 = vst.msk [vmem:[#allocation2 + $0x88] sm:$0xff] %vm662, %v647
        %681 = vst.msk [vmem:[#allocation2 + $0x90] sm:$0xff] %vm662, %v648
        %682 = vst.msk [vmem:[#allocation2 + $0x98] sm:$0xff] %vm662, %v649
        %683 = vst.msk [vmem:[#allocation2 + $0xa0] sm:$0xff] %vm662, %v650
        %684 = vst.msk [vmem:[#allocation2 + $0xa8] sm:$0xff] %vm662, %v651
        %685 = vst.msk [vmem:[#allocation2 + $0xb0] sm:$0xff] %vm662, %v652
        %686 = vst.msk [vmem:[#allocation2 + $0xb8] sm:$0xff] %vm662, %v653
        %687 = vst.msk [vmem:[#allocation2 + $0xc0] sm:$0xff] %vm662, %v654
        %688 = vst.msk [vmem:[#allocation2 + $0xc8] sm:$0xff] %vm662, %v655
        %689 = vst.msk [vmem:[#allocation2 + $0xd0] sm:$0xff] %vm662, %v656
        %690 = vst.msk [vmem:[#allocation2 + $0xd8] sm:$0xff] %vm662, %v657
        %691 = vst.msk [vmem:[#allocation2 + $0xe0] sm:$0xff] %vm662, %v658
        %692 = vst.msk [vmem:[#allocation2 + $0xe8] sm:$0xff] %vm662, %v659
        %693 = vst.msk [vmem:[#allocation2 + $0xf0] sm:$0xff] %vm662, %v660
        %694 = vst.msk [vmem:[#allocation2 + $0xf8] sm:$0xff] %vm662, %v661
        %v695 = vld [vmem:[#allocation2] ss:$2 sm:$0xff]
        %s696 = scalar_lea.vmem [#allocation2], 32
        %v697 = vld [vmem:[%s696] ss:$2 sm:$0xff]
        %s698 = scalar_lea.vmem [#allocation2], 64
        %v699 = vld [vmem:[%s698] ss:$2 sm:$0xff]
        %s700 = scalar_lea.vmem [#allocation2], 96
        %v701 = vld [vmem:[%s700] ss:$2 sm:$0xff]
        %s702 = scalar_lea.vmem [#allocation2], 128
        %v703 = vld [vmem:[%s702] ss:$2 sm:$0xff]
        %s704 = scalar_lea.vmem [#allocation2], 160
        %v705 = vld [vmem:[%s704] ss:$2 sm:$0xff]
        %s706 = scalar_lea.vmem [#allocation2], 192
        %v707 = vld [vmem:[%s706] ss:$2 sm:$0xff]
        %s708 = scalar_lea.vmem [#allocation2], 224
        %v709 = vld [vmem:[%s708] ss:$2 sm:$0xff]
        %s710 = scalar_lea.vmem [#allocation2], 1
        %v711 = vld [vmem:[%s710] ss:$2 sm:$0xff]
        %s712 = scalar_lea.vmem [#allocation2], 33
        %v713 = vld [vmem:[%s712] ss:$2 sm:$0xff]
        %s714 = scalar_lea.vmem [#allocation2], 65
        %v715 = vld [vmem:[%s714] ss:$2 sm:$0xff]
        %s716 = scalar_lea.vmem [#allocation2], 97
        %v717 = vld [vmem:[%s716] ss:$2 sm:$0xff]
        %s718 = scalar_lea.vmem [#allocation2], 129
        %v719 = vld [vmem:[%s718] ss:$2 sm:$0xff]
        %s720 = scalar_lea.vmem [#allocation2], 161
        %v721 = vld [vmem:[%s720] ss:$2 sm:$0xff]
        %s722 = scalar_lea.vmem [#allocation2], 193
        %v723 = vld [vmem:[%s722] ss:$2 sm:$0xff]
        %s724 = scalar_lea.vmem [#allocation2], 225
        %v725 = vld [vmem:[%s724] ss:$2 sm:$0xff]
        %v726 = vmax.f32 %v695, %v711
        %v727 = vmax.f32 %v697, %v713
        %v728 = vmax.f32 %v699, %v715
        %v729 = vmax.f32 %v701, %v717
        %v730 = vmax.f32 %v703, %v719
        %v731 = vmax.f32 %v705, %v721
        %v732 = vmax.f32 %v707, %v723
        %v733 = vmax.f32 %v709, %v725
        %s734 = scalar_lea.vmem [#allocation2], 16
        %v735 = vld [vmem:[%s734] ss:$2 sm:$0xff]
        %s736 = scalar_lea.vmem %s734, 32 [#allocation2]
        %v737 = vld [vmem:[%s736] ss:$2 sm:$0xff]
        %s738 = scalar_lea.vmem %s734, 64 [#allocation2]
        %v739 = vld [vmem:[%s738] ss:$2 sm:$0xff]
        %s740 = scalar_lea.vmem %s734, 96 [#allocation2]
        %v741 = vld [vmem:[%s740] ss:$2 sm:$0xff]
        %s742 = scalar_lea.vmem %s734, 128 [#allocation2]
        %v743 = vld [vmem:[%s742] ss:$2 sm:$0xff]
        %s744 = scalar_lea.vmem %s734, 160 [#allocation2]
        %v745 = vld [vmem:[%s744] ss:$2 sm:$0xff]
        %s746 = scalar_lea.vmem %s734, 192 [#allocation2]
        %v747 = vld [vmem:[%s746] ss:$2 sm:$0xff]
        %s748 = scalar_lea.vmem %s734, 224 [#allocation2]
        %v749 = vld [vmem:[%s748] ss:$2 sm:$0xff]
        %s750 = scalar_lea.vmem %s734, 1 [#allocation2]
        %v751 = vld [vmem:[%s750] ss:$2 sm:$0xff]
        %s752 = scalar_lea.vmem %s734, 33 [#allocation2]
        %v753 = vld [vmem:[%s752] ss:$2 sm:$0xff]
        %s754 = scalar_lea.vmem %s734, 65 [#allocation2]
        %v755 = vld [vmem:[%s754] ss:$2 sm:$0xff]
        %s756 = scalar_lea.vmem %s734, 97 [#allocation2]
        %v757 = vld [vmem:[%s756] ss:$2 sm:$0xff]
        %s758 = scalar_lea.vmem %s734, 129 [#allocation2]
        %v759 = vld [vmem:[%s758] ss:$2 sm:$0xff]
        %s760 = scalar_lea.vmem %s734, 161 [#allocation2]
        %v761 = vld [vmem:[%s760] ss:$2 sm:$0xff]
        %s762 = scalar_lea.vmem %s734, 193 [#allocation2]
        %v763 = vld [vmem:[%s762] ss:$2 sm:$0xff]
        %s764 = scalar_lea.vmem %s734, 225 [#allocation2]
        %v765 = vld [vmem:[%s764] ss:$2 sm:$0xff]
        %v766 = vmax.f32 %v735, %v751
        %v767 = vmax.f32 %v737, %v753
        %v768 = vmax.f32 %v739, %v755
        %v769 = vmax.f32 %v741, %v757
        %v770 = vmax.f32 %v743, %v759
        %v771 = vmax.f32 %v745, %v761
        %v772 = vmax.f32 %v747, %v763
        %v773 = vmax.f32 %v749, %v765
        %v774 = vmax.f32 %v726, %v766
        %v775 = vmax.f32 %v727, %v767
        %v776 = vmax.f32 %v728, %v768
        %v777 = vmax.f32 %v729, %v769
        %v778 = vmax.f32 %v730, %v770
        %v779 = vmax.f32 %v731, %v771
        %v780 = vmax.f32 %v732, %v772
        %v781 = vmax.f32 %v733, %v773
        %782 = vst.msk [vmem:[#allocation3] sm:$0xff] %vm662, 0.0
        %vm783 = vcmask 254976
        %784 = vst.msk [vmem:[#allocation3 + $0x8] sm:$0x3] %vm783, 0.0
        %s785 = scalar_lea.vmem [#allocation3], 144
        %786 = vst.msk [vmem:[%s785] sm:$0xff] %vm662, 0.0
        %787 = vst.msk [vmem:[%s785 + $0x8] sm:$0x3] %vm783, 0.0
        %vm788 = vcmask 253952
        %789 = vst.msk [vmem:[#allocation3] sm:$0x1] %vm788, 0.0
        %790 = vst.msk [vmem:[#allocation3 + $0x10] sm:$0x1] %vm788, 0.0
        %791 = vst.msk [vmem:[#allocation3 + $0x20] sm:$0x1] %vm788, 0.0
        %792 = vst.msk [vmem:[#allocation3 + $0x30] sm:$0x1] %vm788, 0.0
        %793 = vst.msk [vmem:[#allocation3 + $0x40] sm:$0x1] %vm788, 0.0
        %794 = vst.msk [vmem:[#allocation3 + $0x50] sm:$0x1] %vm788, 0.0
        %795 = vst.msk [vmem:[#allocation3 + $0x60] sm:$0x1] %vm788, 0.0
        %796 = vst.msk [vmem:[#allocation3 + $0x70] sm:$0x1] %vm788, 0.0
        %797 = vst.msk [vmem:[#allocation3 + $0x80] sm:$0x1] %vm788, 0.0
        %798 = vst.msk [vmem:[#allocation3 + $0x90] sm:$0x1] %vm788, 0.0
        %799 = vst.msk [vmem:[#allocation3 + $0x9] sm:$0x1] %vm788, 0.0
        %800 = vst.msk [vmem:[#allocation3 + $0x19] sm:$0x1] %vm788, 0.0
        %801 = vst.msk [vmem:[#allocation3 + $0x29] sm:$0x1] %vm788, 0.0
        %802 = vst.msk [vmem:[#allocation3 + $0x39] sm:$0x1] %vm788, 0.0
        %803 = vst.msk [vmem:[#allocation3 + $0x49] sm:$0x1] %vm788, 0.0
        %804 = vst.msk [vmem:[#allocation3 + $0x59] sm:$0x1] %vm788, 0.0
        %805 = vst.msk [vmem:[#allocation3 + $0x69] sm:$0x1] %vm788, 0.0
        %806 = vst.msk [vmem:[#allocation3 + $0x79] sm:$0x1] %vm788, 0.0
        %807 = vst.msk [vmem:[#allocation3 + $0x89] sm:$0x1] %vm788, 0.0
        %808 = vst.msk [vmem:[#allocation3 + $0x99] sm:$0x1] %vm788, 0.0
        %s809 = scalar_lea.vmem [#allocation3], 16
        %810 = vst.msk [vmem:[%s809 + $0x1] sm:$0xff] %vm662, %v774
        %811 = vst.msk [vmem:[%s809 + $0x11] sm:$0xff] %vm662, %v775
        %812 = vst.msk [vmem:[%s809 + $0x21] sm:$0xff] %vm662, %v776
        %813 = vst.msk [vmem:[%s809 + $0x31] sm:$0xff] %vm662, %v777
        %814 = vst.msk [vmem:[%s809 + $0x41] sm:$0xff] %vm662, %v778
        %815 = vst.msk [vmem:[%s809 + $0x51] sm:$0xff] %vm662, %v779
        %816 = vst.msk [vmem:[%s809 + $0x61] sm:$0xff] %vm662, %v780
        %817 = vst.msk [vmem:[%s809 + $0x71] sm:$0xff] %vm662, %v781
        %v818 = vld [vmem:[#allocation3] sm:$0xff]
        %v819 = vld [vmem:[#allocation3 + $0x10] sm:$0xff]
        %v820 = vld [vmem:[#allocation3 + $0x20] sm:$0xff]
        %v821 = vld [vmem:[#allocation3 + $0x30] sm:$0xff]
        %v822 = vld [vmem:[#allocation3 + $0x40] sm:$0xff]
        %v823 = vld [vmem:[#allocation3 + $0x50] sm:$0xff]
        %v824 = vld [vmem:[#allocation3 + $0x60] sm:$0xff]
        %v825 = vld [vmem:[#allocation3 + $0x70] sm:$0xff]
        %v826 = vld [vmem:[#allocation3 + $0x1] sm:$0xff]
        %v827 = vld [vmem:[#allocation3 + $0x11] sm:$0xff]
        %v828 = vld [vmem:[#allocation3 + $0x21] sm:$0xff]
        %v829 = vld [vmem:[#allocation3 + $0x31] sm:$0xff]
        %v830 = vld [vmem:[#allocation3 + $0x41] sm:$0xff]
        %v831 = vld [vmem:[#allocation3 + $0x51] sm:$0xff]
        %v832 = vld [vmem:[#allocation3 + $0x61] sm:$0xff]
        %v833 = vld [vmem:[#allocation3 + $0x71] sm:$0xff]
        %v834 = vld [vmem:[#allocation3 + $0x2] sm:$0xff]
        %v835 = vld [vmem:[#allocation3 + $0x12] sm:$0xff]
        %v836 = vld [vmem:[#allocation3 + $0x22] sm:$0xff]
        %v837 = vld [vmem:[#allocation3 + $0x32] sm:$0xff]
        %v838 = vld [vmem:[#allocation3 + $0x42] sm:$0xff]
        %v839 = vld [vmem:[#allocation3 + $0x52] sm:$0xff]
        %v840 = vld [vmem:[#allocation3 + $0x62] sm:$0xff]
        %v841 = vld [vmem:[#allocation3 + $0x72] sm:$0xff]
        %v842 = vld [vmem:[%s809] sm:$0xff]
        %v843 = vld [vmem:[%s809 + $0x10] sm:$0xff]
        %v844 = vld [vmem:[%s809 + $0x20] sm:$0xff]
        %v845 = vld [vmem:[%s809 + $0x30] sm:$0xff]
        %v846 = vld [vmem:[%s809 + $0x40] sm:$0xff]
        %v847 = vld [vmem:[%s809 + $0x50] sm:$0xff]
        %v848 = vld [vmem:[%s809 + $0x60] sm:$0xff]
        %v849 = vld [vmem:[%s809 + $0x70] sm:$0xff]
        %v850 = vld [vmem:[%s809 + $0x1] sm:$0xff]
        %v851 = vld [vmem:[%s809 + $0x11] sm:$0xff]
        %v852 = vld [vmem:[%s809 + $0x21] sm:$0xff]
        %v853 = vld [vmem:[%s809 + $0x31] sm:$0xff]
        %v854 = vld [vmem:[%s809 + $0x41] sm:$0xff]
        %v855 = vld [vmem:[%s809 + $0x51] sm:$0xff]
        %v856 = vld [vmem:[%s809 + $0x61] sm:$0xff]
        %v857 = vld [vmem:[%s809 + $0x71] sm:$0xff]
        %v858 = vld [vmem:[%s809 + $0x2] sm:$0xff]
        %v859 = vld [vmem:[%s809 + $0x12] sm:$0xff]
        %v860 = vld [vmem:[%s809 + $0x22] sm:$0xff]
        %v861 = vld [vmem:[%s809 + $0x32] sm:$0xff]
        %v862 = vld [vmem:[%s809 + $0x42] sm:$0xff]
        %v863 = vld [vmem:[%s809 + $0x52] sm:$0xff]
        %v864 = vld [vmem:[%s809 + $0x62] sm:$0xff]
        %v865 = vld [vmem:[%s809 + $0x72] sm:$0xff]
        %s866 = scalar_lea.vmem [#allocation3], 32
        %v867 = vld [vmem:[%s866] sm:$0xff]
        %v868 = vld [vmem:[%s866 + $0x10] sm:$0xff]
        %v869 = vld [vmem:[%s866 + $0x20] sm:$0xff]
        %v870 = vld [vmem:[%s866 + $0x30] sm:$0xff]
        %v871 = vld [vmem:[%s866 + $0x40] sm:$0xff]
        %v872 = vld [vmem:[%s866 + $0x50] sm:$0xff]
        %v873 = vld [vmem:[%s866 + $0x60] sm:$0xff]
        %v874 = vld [vmem:[%s866 + $0x70] sm:$0xff]
        %v875 = vld [vmem:[%s866 + $0x1] sm:$0xff]
        %v876 = vld [vmem:[%s866 + $0x11] sm:$0xff]
        %v877 = vld [vmem:[%s866 + $0x21] sm:$0xff]
        %v878 = vld [vmem:[%s866 + $0x31] sm:$0xff]
        %v879 = vld [vmem:[%s866 + $0x41] sm:$0xff]
        %v880 = vld [vmem:[%s866 + $0x51] sm:$0xff]
        %v881 = vld [vmem:[%s866 + $0x61] sm:$0xff]
        %v882 = vld [vmem:[%s866 + $0x71] sm:$0xff]
        %v883 = vld [vmem:[%s866 + $0x2] sm:$0xff]
        %v884 = vld [vmem:[%s866 + $0x12] sm:$0xff]
        %v885 = vld [vmem:[%s866 + $0x22] sm:$0xff]
        %v886 = vld [vmem:[%s866 + $0x32] sm:$0xff]
        %v887 = vld [vmem:[%s866 + $0x42] sm:$0xff]
        %v888 = vld [vmem:[%s866 + $0x52] sm:$0xff]
        %v889 = vld [vmem:[%s866 + $0x62] sm:$0xff]
        %v890 = vld [vmem:[%s866 + $0x72] sm:$0xff]
        %899 = vrot.lane.b32.xlu0 %v826, 32
        %v900 = vpop.permute.xlu0 %899
        %901 = vrot.lane.b32.xlu0 %v827, 32
        %v902 = vpop.permute.xlu0 %901
        %903 = vrot.lane.b32.xlu0 %v828, 32
        %v904 = vpop.permute.xlu0 %903
        %905 = vrot.lane.b32.xlu0 %v829, 32
        %v906 = vpop.permute.xlu0 %905
        %907 = vrot.lane.b32.xlu0 %v830, 32
        %v908 = vpop.permute.xlu0 %907
        %909 = vrot.lane.b32.xlu0 %v831, 32
        %v910 = vpop.permute.xlu0 %909
        %911 = vrot.lane.b32.xlu0 %v832, 32
        %v912 = vpop.permute.xlu0 %911
        %913 = vrot.lane.b32.xlu0 %v833, 32
        %v914 = vpop.permute.xlu0 %913
        %931 = vrot.lane.b32.xlu0 %v834, 64
        %v932 = vpop.permute.xlu0 %931
        %933 = vrot.lane.b32.xlu0 %v835, 64
        %v934 = vpop.permute.xlu0 %933
        %935 = vrot.lane.b32.xlu0 %v836, 64
        %v936 = vpop.permute.xlu0 %935
        %937 = vrot.lane.b32.xlu0 %v837, 64
        %v938 = vpop.permute.xlu0 %937
        %939 = vrot.lane.b32.xlu0 %v838, 64
        %v940 = vpop.permute.xlu0 %939
        %941 = vrot.lane.b32.xlu0 %v839, 64
        %v942 = vpop.permute.xlu0 %941
        %943 = vrot.lane.b32.xlu0 %v840, 64
        %v944 = vpop.permute.xlu0 %943
        %945 = vrot.lane.b32.xlu0 %v841, 64
        %v946 = vpop.permute.xlu0 %945
        %963 = vrot.lane.b32.xlu0 %v842, 96
        %v964 = vpop.permute.xlu0 %963
        %965 = vrot.lane.b32.xlu0 %v843, 96
        %v966 = vpop.permute.xlu0 %965
        %967 = vrot.lane.b32.xlu0 %v844, 96
        %v968 = vpop.permute.xlu0 %967
        %969 = vrot.lane.b32.xlu0 %v845, 96
        %v970 = vpop.permute.xlu0 %969
        %971 = vrot.lane.b32.xlu0 %v846, 96
        %v972 = vpop.permute.xlu0 %971
        %973 = vrot.lane.b32.xlu0 %v847, 96
        %v974 = vpop.permute.xlu0 %973
        %975 = vrot.lane.b32.xlu0 %v848, 96
        %v976 = vpop.permute.xlu0 %975
        %977 = vrot.lane.b32.xlu0 %v849, 96
        %v978 = vpop.permute.xlu0 %977
        %995 = vrot.lane.b32.xlu0 %v858, 32
        %v996 = vpop.permute.xlu0 %995
        %997 = vrot.lane.b32.xlu0 %v859, 32
        %v998 = vpop.permute.xlu0 %997
        %999 = vrot.lane.b32.xlu0 %v860, 32
        %v1000 = vpop.permute.xlu0 %999
        %1001 = vrot.lane.b32.xlu0 %v861, 32
        %v1002 = vpop.permute.xlu0 %1001
        %1003 = vrot.lane.b32.xlu0 %v862, 32
        %v1004 = vpop.permute.xlu0 %1003
        %1005 = vrot.lane.b32.xlu0 %v863, 32
        %v1006 = vpop.permute.xlu0 %1005
        %1007 = vrot.lane.b32.xlu0 %v864, 32
        %v1008 = vpop.permute.xlu0 %1007
        %1009 = vrot.lane.b32.xlu0 %v865, 32
        %v1010 = vpop.permute.xlu0 %1009
        %1027 = vrot.lane.b32.xlu0 %v867, 64
        %v1028 = vpop.permute.xlu0 %1027
        %1029 = vrot.lane.b32.xlu0 %v868, 64
        %v1030 = vpop.permute.xlu0 %1029
        %1031 = vrot.lane.b32.xlu0 %v869, 64
        %v1032 = vpop.permute.xlu0 %1031
        %1033 = vrot.lane.b32.xlu0 %v870, 64
        %v1034 = vpop.permute.xlu0 %1033
        %1035 = vrot.lane.b32.xlu0 %v871, 64
        %v1036 = vpop.permute.xlu0 %1035
        %1037 = vrot.lane.b32.xlu0 %v872, 64
        %v1038 = vpop.permute.xlu0 %1037
        %1039 = vrot.lane.b32.xlu0 %v873, 64
        %v1040 = vpop.permute.xlu0 %1039
        %1041 = vrot.lane.b32.xlu0 %v874, 64
        %v1042 = vpop.permute.xlu0 %1041
        %1059 = vrot.lane.b32.xlu0 %v875, 96
        %v1060 = vpop.permute.xlu0 %1059
        %1061 = vrot.lane.b32.xlu0 %v876, 96
        %v1062 = vpop.permute.xlu0 %1061
        %1063 = vrot.lane.b32.xlu0 %v877, 96
        %v1064 = vpop.permute.xlu0 %1063
        %1065 = vrot.lane.b32.xlu0 %v878, 96
        %v1066 = vpop.permute.xlu0 %1065
        %1067 = vrot.lane.b32.xlu0 %v879, 96
        %v1068 = vpop.permute.xlu0 %1067
        %1069 = vrot.lane.b32.xlu0 %v880, 96
        %v1070 = vpop.permute.xlu0 %1069
        %1071 = vrot.lane.b32.xlu0 %v881, 96
        %v1072 = vpop.permute.xlu0 %1071
        %1073 = vrot.lane.b32.xlu0 %v882, 96
        %v1074 = vpop.permute.xlu0 %1073
        %v1083 = vsel %vm662, %v818, %v900
        %v1084 = vsel %vm662, %v819, %v902
        %v1085 = vsel %vm662, %v820, %v904
        %v1086 = vsel %vm662, %v821, %v906
        %v1087 = vsel %vm662, %v822, %v908
        %v1088 = vsel %vm662, %v823, %v910
        %v1089 = vsel %vm662, %v824, %v912
        %v1090 = vsel %vm662, %v825, %v914
        %vm1091 = vcmask 523264
        %v1092 = vsel %vm1091, %v1083, %v932
        %v1093 = vsel %vm1091, %v1084, %v934
        %v1094 = vsel %vm1091, %v1085, %v936
        %v1095 = vsel %vm1091, %v1086, %v938
        %v1096 = vsel %vm1091, %v1087, %v940
        %v1097 = vsel %vm1091, %v1088, %v942
        %v1098 = vsel %vm1091, %v1089, %v944
        %v1099 = vsel %vm1091, %v1090, %v946
        %vm1100 = vcmask 785408
        %v1101 = vsel %vm1100, %v1092, %v964
        %v1102 = vsel %vm1100, %v1093, %v966
        %v1103 = vsel %vm1100, %v1094, %v968
        %v1104 = vsel %vm1100, %v1095, %v970
        %v1105 = vsel %vm1100, %v1096, %v972
        %v1106 = vsel %vm1100, %v1097, %v974
        %v1107 = vsel %vm1100, %v1098, %v976
        %v1108 = vsel %vm1100, %v1099, %v978
        %v1109 = vsel %vm662, %v850, %v996
        %v1110 = vsel %vm662, %v851, %v998
        %v1111 = vsel %vm662, %v852, %v1000
        %v1112 = vsel %vm662, %v853, %v1002
        %v1113 = vsel %vm662, %v854, %v1004
        %v1114 = vsel %vm662, %v855, %v1006
        %v1115 = vsel %vm662, %v856, %v1008
        %v1116 = vsel %vm662, %v857, %v1010
        %v1117 = vsel %vm1091, %v1109, %v1028
        %v1118 = vsel %vm1091, %v1110, %v1030
        %v1119 = vsel %vm1091, %v1111, %v1032
        %v1120 = vsel %vm1091, %v1112, %v1034
        %v1121 = vsel %vm1091, %v1113, %v1036
        %v1122 = vsel %vm1091, %v1114, %v1038
        %v1123 = vsel %vm1091, %v1115, %v1040
        %v1124 = vsel %vm1091, %v1116, %v1042
        %v1125 = vsel %vm1100, %v1117, %v1060
        %v1126 = vsel %vm1100, %v1118, %v1062
        %v1127 = vsel %vm1100, %v1119, %v1064
        %v1128 = vsel %vm1100, %v1120, %v1066
        %v1129 = vsel %vm1100, %v1121, %v1068
        %v1130 = vsel %vm1100, %v1122, %v1070
        %v1131 = vsel %vm1100, %v1123, %v1072
        %v1132 = vsel %vm1100, %v1124, %v1074
        %v1133 = vpack.c.bf16 %v1102, %v1101
        %v1134 = vpack.c.bf16 %v1126, %v1125
        %v1135 = vpack.c.bf16 %v884, %v883
        %v1136 = vpack.c.bf16 %v1104, %v1103
        %v1137 = vpack.c.bf16 %v1128, %v1127
        %v1138 = vpack.c.bf16 %v886, %v885
        %v1139 = vpack.c.bf16 %v1106, %v1105
        %v1140 = vpack.c.bf16 %v1130, %v1129
        %v1141 = vpack.c.bf16 %v888, %v887
        %v1142 = vpack.c.bf16 %v1108, %v1107
        %v1143 = vpack.c.bf16 %v1132, %v1131
        %v1144 = vpack.c.bf16 %v890, %v889
        %v1145 = vld [vmem:[%s3] sm:$0xf]
        %v1146 = vld [vmem:[%s3 + $0x4] sm:$0xf]
        %v1147 = vld [vmem:[%s3 + $0x8] sm:$0xf]
        %v1148 = vld [vmem:[%s3 + $0xc] sm:$0xf]
        %v1149 = vld [vmem:[%s3 + $0x10] sm:$0xf]
        %v1150 = vld [vmem:[%s3 + $0x14] sm:$0xf]
        %v1151 = vld [vmem:[%s3 + $0x18] sm:$0xf]
        %v1152 = vld [vmem:[%s3 + $0x1c] sm:$0xf]
        %v1153 = vld [vmem:[%s3 + $0x20] sm:$0xf]
        %v1154 = vld [vmem:[%s3 + $0x24] sm:$0xf]
        %v1155 = vld [vmem:[%s3 + $0x28] sm:$0xf]
        %v1156 = vld [vmem:[%s3 + $0x2c] sm:$0xf]
        %v1157 = vld [vmem:[%s3 + $0x30] sm:$0xf]
        %v1158 = vld [vmem:[%s3 + $0x34] sm:$0xf]
        %v1159 = vld [vmem:[%s3 + $0x38] sm:$0xf]
        %v1160 = vld [vmem:[%s3 + $0x3c] sm:$0xf]
        %v1161 = vld [vmem:[%s3 + $0x40] sm:$0xf]
        %v1162 = vld [vmem:[%s3 + $0x44] sm:$0xf]
        %v1163 = vld [vmem:[%s3 + $0x48] sm:$0xf]
        %v1164 = vld [vmem:[%s3 + $0x4c] sm:$0xf]
        %v1165 = vld [vmem:[%s3 + $0x50] sm:$0xf]
        %v1166 = vld [vmem:[%s3 + $0x54] sm:$0xf]
        %v1167 = vld [vmem:[%s3 + $0x58] sm:$0xf]
        %v1168 = vld [vmem:[%s3 + $0x5c] sm:$0xf]
        %v1169 = vld [vmem:[%s3 + $0x60] sm:$0xf]
        %v1170 = vld [vmem:[%s3 + $0x64] sm:$0xf]
        %v1171 = vld [vmem:[%s3 + $0x68] sm:$0xf]
        %v1172 = vld [vmem:[%s3 + $0x6c] sm:$0xf]
        %v1173 = vld [vmem:[%s3 + $0x70] sm:$0xf]
        %v1174 = vld [vmem:[%s3 + $0x74] sm:$0xf]
        %v1175 = vld [vmem:[%s3 + $0x78] sm:$0xf]
        %v1176 = vld [vmem:[%s3 + $0x7c] sm:$0xf]
        %v1177 = vld [vmem:[%s3 + $0x80] sm:$0xf]
        %v1178 = vld [vmem:[%s3 + $0x84] sm:$0xf]
        %v1179 = vld [vmem:[%s3 + $0x88] sm:$0xf]
        %v1180 = vld [vmem:[%s3 + $0x8c] sm:$0xf]
        %v1181 = vld [vmem:[%s4] sm:$0x1]
        %v1183 = vlaneseq
        %v1184 = vshrl.u32 %v1183, 7
        %v1185 = vsub.s32 0, %v1184
        %v1186 = vrot.slane %v1181, %v1185
        %v1224 = vunpack.c.l.b16 %v1145
        %v1225 = vunpack.c.l.b16 %v1146
        %v1226 = vunpack.c.l.b16 %v1147
        %v1227 = vunpack.c.l.b16 %v1148
        %v1228 = vunpack.c.l.b16 %v1149
        %v1229 = vunpack.c.l.b16 %v1150
        %v1230 = vunpack.c.l.b16 %v1151
        %v1231 = vunpack.c.l.b16 %v1152
        %v1232 = vunpack.c.l.b16 %v1153
        %v1233 = vunpack.c.l.b16 %v1154
        %v1234 = vunpack.c.l.b16 %v1155
        %v1235 = vunpack.c.l.b16 %v1156
        %v1236 = vunpack.c.l.b16 %v1157
        %v1237 = vunpack.c.l.b16 %v1158
        %v1238 = vunpack.c.l.b16 %v1159
        %v1239 = vunpack.c.l.b16 %v1160
        %v1240 = vunpack.c.l.b16 %v1161
        %v1241 = vunpack.c.l.b16 %v1162
        %v1242 = vunpack.c.l.b16 %v1163
        %v1243 = vunpack.c.l.b16 %v1164
        %v1244 = vunpack.c.l.b16 %v1165
        %v1245 = vunpack.c.l.b16 %v1166
        %v1246 = vunpack.c.l.b16 %v1167
        %v1247 = vunpack.c.l.b16 %v1168
        %v1248 = vunpack.c.l.b16 %v1169
        %v1249 = vunpack.c.l.b16 %v1170
        %v1250 = vunpack.c.l.b16 %v1171
        %v1251 = vunpack.c.l.b16 %v1172
        %v1252 = vunpack.c.l.b16 %v1173
        %v1253 = vunpack.c.l.b16 %v1174
        %v1254 = vunpack.c.l.b16 %v1175
        %v1255 = vunpack.c.l.b16 %v1176
        %v1256 = vunpack.c.l.b16 %v1177
        %v1257 = vunpack.c.l.b16 %v1178
        %v1258 = vunpack.c.l.b16 %v1179
        %v1259 = vunpack.c.l.b16 %v1180
        %v1260 = vpack.c.b16 %v1225, %v1224
        %v1261 = vpack.c.b16 %v1227, %v1226
        %v1262 = vpack.c.b16 %v1229, %v1228
        %v1263 = vpack.c.b16 %v1231, %v1230
        %v1264 = vpack.c.b16 %v1233, %v1232
        %v1265 = vpack.c.b16 %v1235, %v1234
        %v1266 = vpack.c.b16 %v1237, %v1236
        %v1267 = vpack.c.b16 %v1239, %v1238
        %v1268 = vpack.c.b16 %v1241, %v1240
        %v1269 = vpack.c.b16 %v1243, %v1242
        %v1270 = vpack.c.b16 %v1245, %v1244
        %v1271 = vpack.c.b16 %v1247, %v1246
        %v1272 = vpack.c.b16 %v1249, %v1248
        %v1273 = vpack.c.b16 %v1251, %v1250
        %v1274 = vpack.c.b16 %v1253, %v1252
        %v1275 = vpack.c.b16 %v1255, %v1254
        %v1276 = vpack.c.b16 %v1257, %v1256
        %v1277 = vpack.c.b16 %v1259, %v1258
        %v1297 = vsel %vm662, %v1135, 0
        %v1300 = vsel %vm662, %v1138, 0
        %v1303 = vsel %vm662, %v1141, 0
        %v1306 = vsel %vm662, %v1144, 0
        %1308 = vmatprep.subr.bf16.mxu0 0
        %1309 = vmatpush1.bf16.msra.mxu0 %v1260
        %1310 = vmatprep.subr.bf16.mxu0 0
        %1311 = vmatpush1.bf16.msra.mxu0 %v1261
        %1312 = vmatprep.subr.bf16.mxu0 0
        %1313 = vmatpush1.bf16.msra.mxu0 %v1262
        %1314 = vmatprep.subr.bf16.mxu0 0
        %1315 = vmatpush1.bf16.msra.mxu0 %v1263
        %1316 = vmatprep.subr.bf16.mxu0 0
        %1317 = vmatpush1.bf16.msra.mxu0 %v1264
        %1318 = vmatprep.subr.bf16.mxu0 0
        %1319 = vmatpush1.bf16.msra.mxu0 %v1265
        %1320 = vmatprep.subr.bf16.mxu0 0
        %1321 = vmatpush1.bf16.msra.mxu0 %v1266
        %1322 = vmatprep.subr.bf16.mxu0 0
        %1323 = vmatpush1.bf16.msra.mxu0 %v1267
        %1324 = vmatprep.subr.bf16.mxu0 0
        %1325 = vmatpush1.bf16.msra.mxu0 %v1268
        %1326 = vmatprep.subr.bf16.mxu0 0
        %1327 = vmatpush1.bf16.msra.mxu0 %v1269
        %1328 = vmatprep.subr.bf16.mxu0 0
        %1329 = vmatpush1.bf16.msra.mxu0 %v1270
        %1330 = vmatprep.subr.bf16.mxu0 0
        %1331 = vmatpush1.bf16.msra.mxu0 %v1271
        %1332 = vmatprep.subr.bf16.mxu0 0
        %1333 = vmatpush1.bf16.msra.mxu0 %v1272
        %1334 = vmatprep.subr.bf16.mxu0 0
        %1335 = vmatpush1.bf16.msra.mxu0 %v1273
        %1336 = vmatprep.subr.bf16.mxu0 0
        %1337 = vmatpush1.bf16.msra.mxu0 %v1274
        %1338 = vmatprep.subr.bf16.mxu0 0
        %1339 = vmatpush1.bf16.msra.mxu0 %v1275
        %1340 = vmatprep.mubr.bf16.mxu0 %v1134
        %1341 = vmatmul.mubr.bf16.gmra.mrb[0].mxu0 %v1133
        %v1342 = vpop.f32.mrb[0].mxu0
        %v1343 = vadd.f32 %v1186, %v1342
        %v1344 = vpop.f32.mrb[0].mxu0
        %v1345 = vpop.f32.mrb[0].mxu0
        %v1346 = vadd.f32 %v1186, %v1345
        %v1347 = vpop.f32.mrb[0].mxu0
        %1348 = vmatprep.mubr.bf16.mxu0 %v1137
        %1349 = vmatmul.mubr.bf16.gmra.mrb[0].mxu0 %v1136
        %v1350 = vpop.f32.mrb[0].mxu0
        %v1351 = vadd.f32 %v1186, %v1350
        %v1352 = vpop.f32.mrb[0].mxu0
        %v1353 = vpop.f32.mrb[0].mxu0
        %v1354 = vadd.f32 %v1186, %v1353
        %v1355 = vpop.f32.mrb[0].mxu0
        %1356 = vmatprep.mubr.bf16.mxu0 %v1140
        %1357 = vmatmul.mubr.bf16.gmra.mrb[0].mxu0 %v1139
        %v1358 = vpop.f32.mrb[0].mxu0
        %v1359 = vadd.f32 %v1186, %v1358
        %v1360 = vpop.f32.mrb[0].mxu0
        %v1361 = vpop.f32.mrb[0].mxu0
        %v1362 = vadd.f32 %v1186, %v1361
        %v1363 = vpop.f32.mrb[0].mxu0
        %1364 = vmatprep.mubr.bf16.mxu0 %v1143
        %1365 = vmatmul.mubr.bf16.gmra.mrb[0].mxu0 %v1142
        %v1366 = vpop.f32.mrb[0].mxu0
        %v1367 = vadd.f32 %v1186, %v1366
        %v1368 = vpop.f32.mrb[0].mxu0
        %v1369 = vpop.f32.mrb[0].mxu0
        %v1370 = vadd.f32 %v1186, %v1369
        %v1371 = vpop.f32.mrb[0].mxu0
        %1372 = vdwg.mxu0
        %1373 = vmatprep.subr.bf16.mxu0 0
        %1374 = vmatpush1.bf16.msra.mxu0 %v1276
        %1375 = vmatprep.subr.bf16.mxu0 0
        %1376 = vmatpush1.bf16.msra.mxu0 %v1277
        %1377 = vmatprep.subr.bf16.mxu0 0
        %1378 = vmatpush1.bf16.msra.mxu0 0
        %1379 = vmatprep.subr.bf16.mxu0 0
        %1380 = vmatpush1.bf16.msra.mxu0 0
        %1381 = vmatprep.subr.bf16.mxu0 0
        %1382 = vmatpush1.bf16.msra.mxu0 0
        %1383 = vmatprep.subr.bf16.mxu0 0
        %1384 = vmatpush1.bf16.msra.mxu0 0
        %1385 = vmatprep.subr.bf16.mxu0 0
        %1386 = vmatpush1.bf16.msra.mxu0 0
        %1387 = vmatprep.subr.bf16.mxu0 0
        %1388 = vmatpush1.bf16.msra.mxu0 0
        %1389 = vmatprep.subr.bf16.mxu0 0
        %1390 = vmatpush1.bf16.msra.mxu0 0
        %1391 = vmatprep.subr.bf16.mxu0 0
        %1392 = vmatpush1.bf16.msra.mxu0 0
        %1393 = vmatprep.subr.bf16.mxu0 0
        %1394 = vmatpush1.bf16.msra.mxu0 0
        %1395 = vmatprep.subr.bf16.mxu0 0
        %1396 = vmatpush1.bf16.msra.mxu0 0
        %1397 = vmatprep.subr.bf16.mxu0 0
        %1398 = vmatpush1.bf16.msra.mxu0 0
        %1399 = vmatprep.subr.bf16.mxu0 0
        %1400 = vmatpush1.bf16.msra.mxu0 0
        %1401 = vmatprep.subr.bf16.mxu0 0
        %1402 = vmatpush1.bf16.msra.mxu0 0
        %1403 = vmatprep.subr.bf16.mxu0 0
        %1404 = vmatpush1.bf16.msra.mxu0 0
        %1405 = vmatprep.mubr.bf16.mxu0 0
        %1406 = vmatmul.mubr.bf16.gmra.mrb[0].mxu0 %v1297
        %v1407 = vpop.f32.mrb[0].mxu0
        %v1408 = vadd.f32 %v1343, %v1407
        %v1409 = vpop.f32.mrb[0].mxu0
        %v1410 = vpop.f32.mrb[0].mxu0
        %v1411 = vadd.f32 %v1346, %v1410
        %v1412 = vpop.f32.mrb[0].mxu0
        %1413 = vmatprep.mubr.bf16.mxu0 0
        %1414 = vmatmul.mubr.bf16.gmra.mrb[0].mxu0 %v1300
        %v1415 = vpop.f32.mrb[0].mxu0
        %v1416 = vadd.f32 %v1351, %v1415
        %v1417 = vpop.f32.mrb[0].mxu0
        %v1418 = vpop.f32.mrb[0].mxu0
        %v1419 = vadd.f32 %v1354, %v1418
        %v1420 = vpop.f32.mrb[0].mxu0
        %1421 = vmatprep.mubr.bf16.mxu0 0
        %1422 = vmatmul.mubr.bf16.gmra.mrb[0].mxu0 %v1303
        %v1423 = vpop.f32.mrb[0].mxu0
        %v1424 = vadd.f32 %v1359, %v1423
        %v1425 = vpop.f32.mrb[0].mxu0
        %v1426 = vpop.f32.mrb[0].mxu0
        %v1427 = vadd.f32 %v1362, %v1426
        %v1428 = vpop.f32.mrb[0].mxu0
        %1429 = vmatprep.mubr.bf16.mxu0 0
        %1430 = vmatmul.mubr.bf16.gmra.mrb[0].mxu0 %v1306
        %v1431 = vpop.f32.mrb[0].mxu0
        %v1432 = vadd.f32 %v1367, %v1431
        %v1433 = vpop.f32.mrb[0].mxu0
        %v1434 = vpop.f32.mrb[0].mxu0
        %v1435 = vadd.f32 %v1370, %v1434
        %v1436 = vpop.f32.mrb[0].mxu0
        %1437 = vdwg.mxu0
        %v1438 = vmax.f32 %v1408, 0.0
        %v1439 = vmax.f32 %v1411, 0.0
        %v1440 = vmax.f32 %v1416, 0.0
        %v1441 = vmax.f32 %v1419, 0.0
        %v1442 = vmax.f32 %v1424, 0.0
        %v1443 = vmax.f32 %v1427, 0.0
        %v1444 = vmax.f32 %v1432, 0.0
        %v1445 = vmax.f32 %v1435, 0.0
        %1446 = vst.msk [vmem:[#allocation4] sm:$0xff] %vm662, %v1438
        %1447 = vst.msk [vmem:[#allocation4 + $0x8] sm:$0xff] %vm662, %v1439
        %1448 = vst.msk [vmem:[#allocation4 + $0x10] sm:$0xff] %vm662, %v1440
        %1449 = vst.msk [vmem:[#allocation4 + $0x18] sm:$0xff] %vm662, %v1441
        %1450 = vst.msk [vmem:[#allocation4 + $0x20] sm:$0xff] %vm662, %v1442
        %1451 = vst.msk [vmem:[#allocation4 + $0x28] sm:$0xff] %vm662, %v1443
        %1452 = vst.msk [vmem:[#allocation4 + $0x30] sm:$0xff] %vm662, %v1444
        %1453 = vst.msk [vmem:[#allocation4 + $0x38] sm:$0xff] %vm662, %v1445
        %v1454 = vld [vmem:[#allocation4] ss:$2 sm:$0xf]
        %s1455 = scalar_lea.vmem [#allocation4], 16
        %v1456 = vld [vmem:[%s1455] ss:$2 sm:$0xf]
        %s1457 = scalar_lea.vmem [#allocation4], 32
        %v1458 = vld [vmem:[%s1457] ss:$2 sm:$0xf]
        %s1459 = scalar_lea.vmem [#allocation4], 48
        %v1460 = vld [vmem:[%s1459] ss:$2 sm:$0xf]
        %s1461 = scalar_lea.vmem [#allocation4], 1
        %v1462 = vld [vmem:[%s1461] ss:$2 sm:$0xf]
        %s1463 = scalar_lea.vmem [#allocation4], 17
        %v1464 = vld [vmem:[%s1463] ss:$2 sm:$0xf]
        %s1465 = scalar_lea.vmem [#allocation4], 33
        %v1466 = vld [vmem:[%s1465] ss:$2 sm:$0xf]
        %s1467 = scalar_lea.vmem [#allocation4], 49
        %v1468 = vld [vmem:[%s1467] ss:$2 sm:$0xf]
        %v1469 = vmax.f32 %v1454, %v1462
        %v1470 = vmax.f32 %v1456, %v1464
        %v1471 = vmax.f32 %v1458, %v1466
        %v1472 = vmax.f32 %v1460, %v1468
        %s1473 = scalar_lea.vmem [#allocation4], 8
        %v1474 = vld [vmem:[%s1473] ss:$2 sm:$0xf]
        %s1475 = scalar_lea.vmem %s1473, 16 [#allocation4]
        %v1476 = vld [vmem:[%s1475] ss:$2 sm:$0xf]
        %s1477 = scalar_lea.vmem %s1473, 32 [#allocation4]
        %v1478 = vld [vmem:[%s1477] ss:$2 sm:$0xf]
        %s1479 = scalar_lea.vmem %s1473, 48 [#allocation4]
        %v1480 = vld [vmem:[%s1479] ss:$2 sm:$0xf]
        %s1481 = scalar_lea.vmem %s1473, 1 [#allocation4]
        %v1482 = vld [vmem:[%s1481] ss:$2 sm:$0xf]
        %s1483 = scalar_lea.vmem %s1473, 17 [#allocation4]
        %v1484 = vld [vmem:[%s1483] ss:$2 sm:$0xf]
        %s1485 = scalar_lea.vmem %s1473, 33 [#allocation4]
        %v1486 = vld [vmem:[%s1485] ss:$2 sm:$0xf]
        %s1487 = scalar_lea.vmem %s1473, 49 [#allocation4]
        %v1488 = vld [vmem:[%s1487] ss:$2 sm:$0xf]
        %v1489 = vmax.f32 %v1474, %v1482
        %v1490 = vmax.f32 %v1476, %v1484
        %v1491 = vmax.f32 %v1478, %v1486
        %v1492 = vmax.f32 %v1480, %v1488
        %v1493 = vmax.f32 %v1469, %v1489
        %v1494 = vmax.f32 %v1470, %v1490
        %v1495 = vmax.f32 %v1471, %v1491
        %v1496 = vmax.f32 %v1472, %v1492
        %v1498 = vrot.slane %v1493, 1
        %1499 = vrot.lane.b32.xlu0 %v1498, 32
        %v1500 = vpop.permute.xlu0 %1499
        %v1502 = vrot.slane %v1493, 2
        %1503 = vrot.lane.b32.xlu0 %v1502, 64
        %v1504 = vpop.permute.xlu0 %1503
        %v1506 = vrot.slane %v1493, 3
        %1507 = vrot.lane.b32.xlu0 %v1506, 96
        %v1508 = vpop.permute.xlu0 %1507
        %v1511 = vrot.slane %v1494, 1
        %1512 = vrot.lane.b32.xlu0 %v1511, 32
        %v1513 = vpop.permute.xlu0 %1512
        %v1515 = vrot.slane %v1494, 2
        %1516 = vrot.lane.b32.xlu0 %v1515, 64
        %v1517 = vpop.permute.xlu0 %1516
        %v1519 = vrot.slane %v1494, 3
        %1520 = vrot.lane.b32.xlu0 %v1519, 96
        %v1521 = vpop.permute.xlu0 %1520
        %v1524 = vrot.slane %v1495, 1
        %1525 = vrot.lane.b32.xlu0 %v1524, 32
        %v1526 = vpop.permute.xlu0 %1525
        %v1528 = vrot.slane %v1495, 2
        %1529 = vrot.lane.b32.xlu0 %v1528, 64
        %v1530 = vpop.permute.xlu0 %1529
        %v1532 = vrot.slane %v1495, 3
        %1533 = vrot.lane.b32.xlu0 %v1532, 96
        %v1534 = vpop.permute.xlu0 %1533
        %v1537 = vrot.slane %v1496, 1
        %1538 = vrot.lane.b32.xlu0 %v1537, 32
        %v1539 = vpop.permute.xlu0 %1538
        %v1541 = vrot.slane %v1496, 2
        %1542 = vrot.lane.b32.xlu0 %v1541, 64
        %v1543 = vpop.permute.xlu0 %1542
        %v1545 = vrot.slane %v1496, 3
        %1546 = vrot.lane.b32.xlu0 %v1545, 96
        %v1547 = vpop.permute.xlu0 %1546
        %v1549 = vsel %vm662, %v1493, %v1500
        %v1550 = vsel %vm1091, %v1549, %v1504
        %v1551 = vsel %vm1100, %v1550, %v1508
        %v1552 = vsel %vm662, %v1494, %v1513
        %v1553 = vsel %vm1091, %v1552, %v1517
        %v1554 = vsel %vm1100, %v1553, %v1521
        %v1555 = vsel %vm662, %v1495, %v1526
        %v1556 = vsel %vm1091, %v1555, %v1530
        %v1557 = vsel %vm1100, %v1556, %v1534
        %v1558 = vsel %vm662, %v1496, %v1539
        %v1559 = vsel %vm1091, %v1558, %v1543
        %v1560 = vsel %vm1100, %v1559, %v1547
        %v1561 = vpack.c.bf16 %v1551, %v1551
        %v1562 = vpack.c.bf16 %v1554, %v1554
        %v1563 = vpack.c.bf16 %v1557, %v1557
        %v1564 = vpack.c.bf16 %v1560, %v1560
        %v1565 = vld [vmem:[%s5] sm:$0xf]
        %v1566 = vld [vmem:[%s5 + $0x4] sm:$0xf]
        %v1567 = vld [vmem:[%s5 + $0x8] sm:$0xf]
        %v1568 = vld [vmem:[%s5 + $0xc] sm:$0xf]
        %v1569 = vld [vmem:[%s5 + $0x10] sm:$0xf]
        %v1570 = vld [vmem:[%s5 + $0x14] sm:$0xf]
        %v1571 = vld [vmem:[%s5 + $0x18] sm:$0xf]
        %v1572 = vld [vmem:[%s5 + $0x1c] sm:$0xf]
        %v1573 = vld [vmem:[%s5 + $0x20] sm:$0xf]
        %v1574 = vld [vmem:[%s5 + $0x24] sm:$0xf]
        %v1575 = vld [vmem:[%s5 + $0x28] sm:$0xf]
        %v1576 = vld [vmem:[%s5 + $0x2c] sm:$0xf]
        %v1577 = vld [vmem:[%s5 + $0x30] sm:$0xf]
        %v1578 = vld [vmem:[%s5 + $0x34] sm:$0xf]
        %v1579 = vld [vmem:[%s5 + $0x38] sm:$0xf]
        %v1580 = vld [vmem:[%s5 + $0x3c] sm:$0xf]
        %v1581 = vld [vmem:[%s5 + $0x40] sm:$0xf]
        %v1582 = vld [vmem:[%s5 + $0x44] sm:$0xf]
        %v1583 = vld [vmem:[%s5 + $0x48] sm:$0xf]
        %v1584 = vld [vmem:[%s5 + $0x4c] sm:$0xf]
        %v1585 = vld [vmem:[%s5 + $0x50] sm:$0xf]
        %v1586 = vld [vmem:[%s5 + $0x54] sm:$0xf]
        %v1587 = vld [vmem:[%s5 + $0x58] sm:$0xf]
        %v1588 = vld [vmem:[%s5 + $0x5c] sm:$0xf]
        %v1589 = vld [vmem:[%s5 + $0x60] sm:$0xf]
        %v1590 = vld [vmem:[%s5 + $0x64] sm:$0xf]
        %v1591 = vld [vmem:[%s5 + $0x68] sm:$0xf]
        %v1592 = vld [vmem:[%s5 + $0x6c] sm:$0xf]
        %v1593 = vld [vmem:[%s5 + $0x70] sm:$0xf]
        %v1594 = vld [vmem:[%s5 + $0x74] sm:$0xf]
        %v1595 = vld [vmem:[%s5 + $0x78] sm:$0xf]
        %v1596 = vld [vmem:[%s5 + $0x7c] sm:$0xf]
        %v1597 = vld [vmem:[%s5 + $0x80] sm:$0xf]
        %v1598 = vld [vmem:[%s5 + $0x84] sm:$0xf]
        %v1599 = vld [vmem:[%s5 + $0x88] sm:$0xf]
        %v1600 = vld [vmem:[%s5 + $0x8c] sm:$0xf]
        %v1601 = vld [vmem:[%s5 + $0x90] sm:$0xf]
        %v1602 = vld [vmem:[%s5 + $0x94] sm:$0xf]
        %v1603 = vld [vmem:[%s5 + $0x98] sm:$0xf]
        %v1604 = vld [vmem:[%s5 + $0x9c] sm:$0xf]
        %v1605 = vld [vmem:[%s5 + $0xa0] sm:$0xf]
        %v1606 = vld [vmem:[%s5 + $0xa4] sm:$0xf]
        %v1607 = vld [vmem:[%s5 + $0xa8] sm:$0xf]
        %v1608 = vld [vmem:[%s5 + $0xac] sm:$0xf]
        %v1609 = vld [vmem:[%s5 + $0xb0] sm:$0xf]
        %v1610 = vld [vmem:[%s5 + $0xb4] sm:$0xf]
        %v1611 = vld [vmem:[%s5 + $0xb8] sm:$0xf]
        %v1612 = vld [vmem:[%s5 + $0xbc] sm:$0xf]
        %v1613 = vld [vmem:[%s5 + $0xc0] sm:$0xf]
        %v1614 = vld [vmem:[%s5 + $0xc4] sm:$0xf]
        %v1615 = vld [vmem:[%s5 + $0xc8] sm:$0xf]
        %v1616 = vld [vmem:[%s5 + $0xcc] sm:$0xf]
        %v1617 = vld [vmem:[%s5 + $0xd0] sm:$0xf]
        %v1618 = vld [vmem:[%s5 + $0xd4] sm:$0xf]
        %v1619 = vld [vmem:[%s5 + $0xd8] sm:$0xf]
        %v1620 = vld [vmem:[%s5 + $0xdc] sm:$0xf]
        %v1621 = vld [vmem:[%s5 + $0xe0] sm:$0xf]
        %v1622 = vld [vmem:[%s5 + $0xe4] sm:$0xf]
        %v1623 = vld [vmem:[%s5 + $0xe8] sm:$0xf]
        %v1624 = vld [vmem:[%s5 + $0xec] sm:$0xf]
        %v1625 = vld [vmem:[%s5 + $0xf0] sm:$0xf]
        %v1626 = vld [vmem:[%s5 + $0xf4] sm:$0xf]
        %v1627 = vld [vmem:[%s5 + $0xf8] sm:$0xf]
        %v1628 = vld [vmem:[%s5 + $0xfc] sm:$0xf]
        %v1629 = vld [vmem:[%s6] sm:$0x1]
        %v1694 = vunpack.c.l.b16 %v1565
        %v1695 = vunpack.c.l.b16 %v1566
        %v1696 = vunpack.c.l.b16 %v1567
        %v1697 = vunpack.c.l.b16 %v1568
        %v1698 = vunpack.c.l.b16 %v1569
        %v1699 = vunpack.c.l.b16 %v1570
        %v1700 = vunpack.c.l.b16 %v1571
        %v1701 = vunpack.c.l.b16 %v1572
        %v1702 = vunpack.c.l.b16 %v1573
        %v1703 = vunpack.c.l.b16 %v1574
        %v1704 = vunpack.c.l.b16 %v1575
        %v1705 = vunpack.c.l.b16 %v1576
        %v1706 = vunpack.c.l.b16 %v1577
        %v1707 = vunpack.c.l.b16 %v1578
        %v1708 = vunpack.c.l.b16 %v1579
        %v1709 = vunpack.c.l.b16 %v1580
        %v1710 = vunpack.c.l.b16 %v1581
        %v1711 = vunpack.c.l.b16 %v1582
        %v1712 = vunpack.c.l.b16 %v1583
        %v1713 = vunpack.c.l.b16 %v1584
        %v1714 = vunpack.c.l.b16 %v1585
        %v1715 = vunpack.c.l.b16 %v1586
        %v1716 = vunpack.c.l.b16 %v1587
        %v1717 = vunpack.c.l.b16 %v1588
        %v1718 = vunpack.c.l.b16 %v1589
        %v1719 = vunpack.c.l.b16 %v1590
        %v1720 = vunpack.c.l.b16 %v1591
        %v1721 = vunpack.c.l.b16 %v1592
        %v1722 = vunpack.c.l.b16 %v1593
        %v1723 = vunpack.c.l.b16 %v1594
        %v1724 = vunpack.c.l.b16 %v1595
        %v1725 = vunpack.c.l.b16 %v1596
        %v1726 = vunpack.c.l.b16 %v1597
        %v1727 = vunpack.c.l.b16 %v1598
        %v1728 = vunpack.c.l.b16 %v1599
        %v1729 = vunpack.c.l.b16 %v1600
        %v1730 = vunpack.c.l.b16 %v1601
        %v1731 = vunpack.c.l.b16 %v1602
        %v1732 = vunpack.c.l.b16 %v1603
        %v1733 = vunpack.c.l.b16 %v1604
        %v1734 = vunpack.c.l.b16 %v1605
        %v1735 = vunpack.c.l.b16 %v1606
        %v1736 = vunpack.c.l.b16 %v1607
        %v1737 = vunpack.c.l.b16 %v1608
        %v1738 = vunpack.c.l.b16 %v1609
        %v1739 = vunpack.c.l.b16 %v1610
        %v1740 = vunpack.c.l.b16 %v1611
        %v1741 = vunpack.c.l.b16 %v1612
        %v1742 = vunpack.c.l.b16 %v1613
        %v1743 = vunpack.c.l.b16 %v1614
        %v1744 = vunpack.c.l.b16 %v1615
        %v1745 = vunpack.c.l.b16 %v1616
        %v1746 = vunpack.c.l.b16 %v1617
        %v1747 = vunpack.c.l.b16 %v1618
        %v1748 = vunpack.c.l.b16 %v1619
        %v1749 = vunpack.c.l.b16 %v1620
        %v1750 = vunpack.c.l.b16 %v1621
        %v1751 = vunpack.c.l.b16 %v1622
        %v1752 = vunpack.c.l.b16 %v1623
        %v1753 = vunpack.c.l.b16 %v1624
        %v1754 = vunpack.c.l.b16 %v1625
        %v1755 = vunpack.c.l.b16 %v1626
        %v1756 = vunpack.c.l.b16 %v1627
        %v1757 = vunpack.c.l.b16 %v1628
        %v1758 = vpack.c.b16 %v1695, %v1694
        %v1759 = vpack.c.b16 %v1697, %v1696
        %v1760 = vpack.c.b16 %v1699, %v1698
        %v1761 = vpack.c.b16 %v1701, %v1700
        %v1762 = vpack.c.b16 %v1703, %v1702
        %v1763 = vpack.c.b16 %v1705, %v1704
        %v1764 = vpack.c.b16 %v1707, %v1706
        %v1765 = vpack.c.b16 %v1709, %v1708
        %v1766 = vpack.c.b16 %v1711, %v1710
        %v1767 = vpack.c.b16 %v1713, %v1712
        %v1768 = vpack.c.b16 %v1715, %v1714
        %v1769 = vpack.c.b16 %v1717, %v1716
        %v1770 = vpack.c.b16 %v1719, %v1718
        %v1771 = vpack.c.b16 %v1721, %v1720
        %v1772 = vpack.c.b16 %v1723, %v1722
        %v1773 = vpack.c.b16 %v1725, %v1724
        %v1774 = vpack.c.b16 %v1727, %v1726
        %v1775 = vpack.c.b16 %v1729, %v1728
        %v1776 = vpack.c.b16 %v1731, %v1730
        %v1777 = vpack.c.b16 %v1733, %v1732
        %v1778 = vpack.c.b16 %v1735, %v1734
        %v1779 = vpack.c.b16 %v1737, %v1736
        %v1780 = vpack.c.b16 %v1739, %v1738
        %v1781 = vpack.c.b16 %v1741, %v1740
        %v1782 = vpack.c.b16 %v1743, %v1742
        %v1783 = vpack.c.b16 %v1745, %v1744
        %v1784 = vpack.c.b16 %v1747, %v1746
        %v1785 = vpack.c.b16 %v1749, %v1748
        %v1786 = vpack.c.b16 %v1751, %v1750
        %v1787 = vpack.c.b16 %v1753, %v1752
        %v1788 = vpack.c.b16 %v1755, %v1754
        %v1789 = vpack.c.b16 %v1757, %v1756
        %1822 = vmatprep.subr.bf16.mxu0 0
        %1823 = vmatpush1.bf16.msra.mxu0 %v1758
        %1824 = vmatprep.subr.bf16.mxu0 0
        %1825 = vmatpush1.bf16.msra.mxu0 %v1759
        %1826 = vmatprep.subr.bf16.mxu0 0
        %1827 = vmatpush1.bf16.msra.mxu0 %v1760
        %1828 = vmatprep.subr.bf16.mxu0 0
        %1829 = vmatpush1.bf16.msra.mxu0 %v1761
        %1830 = vmatprep.subr.bf16.mxu0 0
        %1831 = vmatpush1.bf16.msra.mxu0 %v1762
        %1832 = vmatprep.subr.bf16.mxu0 0
        %1833 = vmatpush1.bf16.msra.mxu0 %v1763
        %1834 = vmatprep.subr.bf16.mxu0 0
        %1835 = vmatpush1.bf16.msra.mxu0 %v1764
        %1836 = vmatprep.subr.bf16.mxu0 0
        %1837 = vmatpush1.bf16.msra.mxu0 %v1765
        %1838 = vmatprep.subr.bf16.mxu0 0
        %1839 = vmatpush1.bf16.msra.mxu0 %v1766
        %1840 = vmatprep.subr.bf16.mxu0 0
        %1841 = vmatpush1.bf16.msra.mxu0 %v1767
        %1842 = vmatprep.subr.bf16.mxu0 0
        %1843 = vmatpush1.bf16.msra.mxu0 %v1768
        %1844 = vmatprep.subr.bf16.mxu0 0
        %1845 = vmatpush1.bf16.msra.mxu0 %v1769
        %1846 = vmatprep.subr.bf16.mxu0 0
        %1847 = vmatpush1.bf16.msra.mxu0 %v1770
        %1848 = vmatprep.subr.bf16.mxu0 0
        %1849 = vmatpush1.bf16.msra.mxu0 %v1771
        %1850 = vmatprep.subr.bf16.mxu0 0
        %1851 = vmatpush1.bf16.msra.mxu0 %v1772
        %1852 = vmatprep.subr.bf16.mxu0 0
        %1853 = vmatpush1.bf16.msra.mxu0 %v1773
        %1854 = vmatprep.mubr.bf16.mxu0 %v1562
        %1855 = vmatmul.mubr.bf16.gmra.mrb[0].mxu0 %v1561
        %v1856 = vpop.f32.mrb[0].mxu0
        %v1857 = vadd.f32 %v1629, %v1856
        %v1858 = vpop.f32.mrb[0].mxu0
        %v1859 = vpop.f32.mrb[0].mxu0
        %v1860 = vpop.f32.mrb[0].mxu0
        %1861 = vdwg.mxu0
        %1862 = vmatprep.subr.bf16.mxu0 0
        %1863 = vmatpush1.bf16.msra.mxu0 %v1774
        %1864 = vmatprep.subr.bf16.mxu0 0
        %1865 = vmatpush1.bf16.msra.mxu0 %v1775
        %1866 = vmatprep.subr.bf16.mxu0 0
        %1867 = vmatpush1.bf16.msra.mxu0 %v1776
        %1868 = vmatprep.subr.bf16.mxu0 0
        %1869 = vmatpush1.bf16.msra.mxu0 %v1777
        %1870 = vmatprep.subr.bf16.mxu0 0
        %1871 = vmatpush1.bf16.msra.mxu0 %v1778
        %1872 = vmatprep.subr.bf16.mxu0 0
        %1873 = vmatpush1.bf16.msra.mxu0 %v1779
        %1874 = vmatprep.subr.bf16.mxu0 0
        %1875 = vmatpush1.bf16.msra.mxu0 %v1780
        %1876 = vmatprep.subr.bf16.mxu0 0
        %1877 = vmatpush1.bf16.msra.mxu0 %v1781
        %1878 = vmatprep.subr.bf16.mxu0 0
        %1879 = vmatpush1.bf16.msra.mxu0 %v1782
        %1880 = vmatprep.subr.bf16.mxu0 0
        %1881 = vmatpush1.bf16.msra.mxu0 %v1783
        %1882 = vmatprep.subr.bf16.mxu0 0
        %1883 = vmatpush1.bf16.msra.mxu0 %v1784
        %1884 = vmatprep.subr.bf16.mxu0 0
        %1885 = vmatpush1.bf16.msra.mxu0 %v1785
        %1886 = vmatprep.subr.bf16.mxu0 0
        %1887 = vmatpush1.bf16.msra.mxu0 %v1786
        %1888 = vmatprep.subr.bf16.mxu0 0
        %1889 = vmatpush1.bf16.msra.mxu0 %v1787
        %1890 = vmatprep.subr.bf16.mxu0 0
        %1891 = vmatpush1.bf16.msra.mxu0 %v1788
        %1892 = vmatprep.subr.bf16.mxu0 0
        %1893 = vmatpush1.bf16.msra.mxu0 %v1789
        %1894 = vmatprep.mubr.bf16.mxu0 %v1564
        %1895 = vmatmul.mubr.bf16.gmra.mrb[0].mxu0 %v1563
        %v1896 = vpop.f32.mrb[0].mxu0
        %v1897 = vadd.f32 %v1857, %v1896
        %v1898 = vpop.f32.mrb[0].mxu0
        %v1899 = vpop.f32.mrb[0].mxu0
        %v1900 = vpop.f32.mrb[0].mxu0
        %1901 = vdwg.mxu0
        %1902 = vst [vmem:[%s270] sm:$0x1] %v1897
        %s1903 = sand.u32 %s181, 1
        %s1904 = scalar_lea.sflag [#allocation6], %s1903
        %s1905 = sand.u32 %s181, 1
        %s1906 = scalar_lea.vmem [#allocation5], %s1905
        // Predicated region
        $region49: #{baseline_forward.1} parent=47 // pred_check
          %p1907 = pneg %p191
        $region50: #{baseline_forward.1} parent=47 // pred_check_branch
          %1909 = sbr.rel (%p1907) target = $region52
        $region51: #{baseline_forward.1} parent=47 // pred_region
          %s1911 = ssub.s32 16, 16
          %1912 = vsyncadd %s1904, %s1911
          %s1913 = smul.addr %s21, 16
          %s1914 = scalar_lea.hbm %s7, %s1913
          %s1916 = sshll.u32 %s1906, 4
          %s1917 = int_to_ptr.vmem [resolvable:$true] %s1916
          %1919 = dma.vmem_to_hbm [thread:$0]  %s1917, 16, %s1914, %s1904
        $region52: #{baseline_forward.1} parent=47 // pred_fallthru
          _
      $region48: #{baseline_forward.1} parent=5 // pred_fallthru
        _
      %p1920 = scmp.le.s32.totalorder 2, %s16
      // Predicated region
      $region53: #{baseline_forward.1} parent=5 // pred_check
        %p1921 = pneg %p1920
      $region54: #{baseline_forward.1} parent=5 // pred_check_branch
        %1923 = sbr.rel (%p1921) target = $region56
      $region55: #{baseline_forward.1} parent=5 // pred_region
        %s1924 = ssub.s32 %s16, 2
        // Predicated region
        $region57: #{baseline_forward.1} parent=55 // pred_check
          %p1925 = pneg %p197
        $region58: #{baseline_forward.1} parent=55 // pred_check_branch
          %1927 = sbr.rel (%p1925) target = $region60
        $region59: #{baseline_forward.1} parent=55 // pred_region
          %s1928 = sand.u32 %s182, 1
          %s1929 = scalar_lea.sflag [#allocation6], %s1928
          %s1930 = sand.u32 %s182, 1
          %s1931 = scalar_lea.vmem [#allocation5], %s1930
          %1932 = dma.done %s1929, 16
        $region60: #{baseline_forward.1} parent=55 // pred_fallthru
          _
      $region56: #{baseline_forward.1} parent=5 // pred_fallthru
        _
    $region6: #{baseline_forward.1} parent=1 // loop_footer
      %s20 = sadd.s32 1, %s16
    $region7: #{baseline_forward.1} parent=1 // loop_footer_branch
      %15 = sbr.rel target = $region3
    $region8: #{baseline_forward.1} parent=1 // loop_exit
      _
    %1933 = vsyncpa [#allocation6], 1
    %s1934 = scalar_lea.sflag [#allocation6], 1
    %1935 = vsyncpa %s1934, 1

</llo_original>
